<compile_context>
chip_gen: v7x
topology: tpu7x:2x2x1
jax: 0.10.0
libtpu: 0.0.40
codegen_flags: <defaults>
</compile_context>

<pallas_src>
import math

import jax
import jax.numpy as jnp
from jax.experimental import pallas as pl
from jax.experimental.pallas import tpu as pltpu

# ---------------- config (small synthetic shapes) ----------------
B = 2              # batch
CIN = 4            # input_size=4 (constructor's extra-channel path)
H = W = 16         # spatial
COUT = 32          # backbone output channels == in_features of removed fc
KH = KW = 3        # first-conv kernel size
NUM_FEATURES = 32
HIDDEN = 512       # fixed inside the module
NUM_MATERIALS = 8
NUM_SUBSTANCES = 6
BN_EPS = 1e-5
K_IM2COL = KH * KW * CIN

LANES = 128                 # lane-dense width used throughout the kernel
MAT_OFF = 0                 # pred_mat packed at lanes [0, 8)
SUB_OFF = NUM_MATERIALS     # pred_sub packed at lanes [8, 14)
EMB_OFF = 64                # embeddings packed at lanes [64, 96)


# ============ fused kernel: conv+GAP -> fc -> two BN-MLP heads ============
def fused_forward_kernel(p_ref, cw_ref, pool_ref, wfc_ref, w1_ref,
                         v1024_ref, w2_ref, v128_ref, out_ref):
    # p_ref    : (B*H*W, 36)    im2col patches of the whole batch
    # cw_ref   : (36, 128)      conv weight, zero-padded to 128 output lanes
    # pool_ref : (B, B*H*W)     block-diagonal 1/(H*W) global-avg-pool matrix
    # wfc_ref  : (128, 128)     fc weight, output placed at lanes [64, 96)
    # w1_ref   : (128, 1024)    both heads' first Linear, input rows at [64, 96)
    # v1024_ref: (3, 1024)      rows: b1 | gamma | beta (both heads concatenated)
    # w2_ref   : (1024, 128)    block-diagonal second Linear (mat -> 0:8, sub -> 8:14)
    # v128_ref : (3, 128)       rows: conv bias | fc bias | second-Linear bias (packed)
    # out_ref  : (B, 128)       packed [pred_mat | pred_sub | ... | embeddings | ...]
    v128 = v128_ref[...]
    v1024 = v1024_ref[...]

    # conv 3x3 (as im2col matmul) + bias + ReLU     -> (B*H*W, 128); lanes 32:128 stay 0
    y = jnp.dot(p_ref[...], cw_ref[...], preferred_element_type=jnp.float32)
    y = jnp.maximum(y + v128[0:1, :], 0.0)

    # global average pool folded into the MXU       -> (B, 128)
    feats = jnp.dot(pool_ref[...], y, preferred_element_type=jnp.float32)

    # embeddings = ReLU(fc(feats)), landing in lanes [EMB_OFF, EMB_OFF+32)
    emb = jnp.maximum(
        jnp.dot(feats, wfc_ref[...], preferred_element_type=jnp.float32) + v128[1:2, :],
        0.0)

    # both heads' first Linear, concatenated along the feature axis -> (B, 1024)
    h = jnp.dot(emb, w1_ref[...], preferred_element_type=jnp.float32) + v1024[0:1, :]
    # BatchNorm1d, training-mode forward: batch mean / biased batch variance
    # (per-column, so the two-head concatenation is numerically identical)
    mean = jnp.mean(h, axis=0, keepdims=True)
    var = jnp.mean((h - mean) ** 2, axis=0, keepdims=True)
    hn = (h - mean) * jax.lax.rsqrt(var + BN_EPS) * v1024[1:2, :] + v1024[2:3, :]
    hn = jnp.maximum(hn, 0.0)                                        # ReLU

    # both heads' second Linear as one block-diagonal matmul -> logits in lanes 0:14
    logits = jnp.dot(hn, w2_ref[...], preferred_element_type=jnp.float32) + v128[2:3, :]

    # logits and embeddings occupy disjoint lanes -> one unmasked 128-lane store
    out_ref[...] = logits + emb


# ---------------- JAX glue ----------------
def _full_spec(shape):
    nd = len(shape)
    return pl.BlockSpec(shape, lambda i, _nd=nd: (0,) * _nd)


def im2col(x_nhwc):
    # (B, H, W, CIN) -> (B*H*W, KH*KW*CIN), zero padding 1, stride 1
    xp = jnp.pad(x_nhwc, ((0, 0), (1, 1), (1, 1), (0, 0)))
    cols = []
    for kh in range(KH):
        for kw in range(KW):
            cols.append(xp[:, kh:kh + H, kw:kw + W, :])        # (B, H, W, CIN)
    p = jnp.stack(cols, axis=3)                                 # (B, H, W, KH*KW, CIN)
    return p.reshape(B * H * W, K_IM2COL)


def fl_model_forward(x_nchw, pp):
    # PyTorch conv inputs are NCHW; convert to NHWC for the kernel.
    x_nhwc = jnp.transpose(x_nchw, (0, 2, 3, 1))
    patches = im2col(x_nhwc)                                    # (B*H*W, 36)

    ins = (patches, pp["conv_w"], pp["pool"], pp["fc_w"], pp["w1"],
           pp["vecs_1024"], pp["w2"], pp["vecs_128"])
    packed = pl.pallas_call(
        fused_forward_kernel,
        out_shape=jax.ShapeDtypeStruct((B, LANES), jnp.float32),
        grid=(1,),
        in_specs=[_full_spec(a.shape) for a in ins],
        out_specs=_full_spec((B, LANES)),
        compiler_params=pltpu.CompilerParams(
            dimension_semantics=("arbitrary",)),   # tiny model: keep single-core
    )(*ins)

    pred_mat = packed[:, MAT_OFF:MAT_OFF + NUM_MATERIALS]
    pred_sub = packed[:, SUB_OFF:SUB_OFF + NUM_SUBSTANCES]
    emb = packed[:, EMB_OFF:EMB_OFF + NUM_FEATURES]
    return pred_mat, pred_sub, emb


# ---------------- deterministic parameter init (synthetic, no checkpoint) ----------------
def init_params(key):
    ks = jax.random.split(key, 7)

    # first conv: PyTorch layout (COUT, CIN, KH, KW), incl. the normal(0, sqrt(2/n)) extra channel
    n = KH * KW * COUT
    conv_w = jax.random.normal(ks[0], (COUT, CIN, KH, KW), jnp.float32) * math.sqrt(2.0 / n)
    conv_b = jax.random.normal(ks[1], (COUT,), jnp.float32) * 0.01

    def linear(k, fan_in, fan_out):
        kw_, kb_ = jax.random.split(k)
        bound = 1.0 / math.sqrt(fan_in)
        w = jax.random.uniform(kw_, (fan_out, fan_in), jnp.float32, -bound, bound)
        b = jax.random.uniform(kb_, (fan_out,), jnp.float32, -bound, bound)
        return jnp.transpose(w), b                 # stored as (in, out), bias (out,)

    fc_w, fc_b = linear(ks[2], COUT, NUM_FEATURES)
    mat_w1, mat_b1 = linear(ks[3], NUM_FEATURES, HIDDEN)
    mat_w2, mat_b2 = linear(ks[4], HIDDEN, NUM_MATERIALS)
    sub_w1, sub_b1 = linear(ks[5], NUM_FEATURES, HIDDEN)
    sub_w2, sub_b2 = linear(ks[6], HIDDEN, NUM_SUBSTANCES)

    return dict(
        conv_w=conv_w, conv_b=conv_b, fc_w=fc_w, fc_b=fc_b,
        mat_w1=mat_w1, mat_b1=mat_b1,
        mat_gamma=jnp.ones((HIDDEN,), jnp.float32), mat_beta=jnp.zeros((HIDDEN,), jnp.float32),
        mat_w2=mat_w2, mat_b2=mat_b2,
        sub_w1=sub_w1, sub_b1=sub_b1,
        sub_gamma=jnp.ones((HIDDEN,), jnp.float32), sub_beta=jnp.zeros((HIDDEN,), jnp.float32),
        sub_w2=sub_w2, sub_b2=sub_b2,
    )


def pack_params(p):
    """Host-side one-time packing: few, lane-dense kernel operands."""
    # conv weight -> ((kh,kw,cin), cout) matching the im2col column order, padded to 128 lanes
    conv_w = jnp.transpose(p["conv_w"], (2, 3, 1, 0)).reshape(K_IM2COL, COUT)
    conv_w = jnp.pad(conv_w, ((0, 0), (0, LANES - COUT)))
    conv_b = jnp.pad(p["conv_b"], (0, LANES - COUT))                        # (128,)

    # fc placed so the embedding lands in lanes [EMB_OFF, EMB_OFF+32)
    fc_w = jnp.zeros((LANES, LANES), jnp.float32)
    fc_w = fc_w.at[:COUT, EMB_OFF:EMB_OFF + NUM_FEATURES].set(p["fc_w"])
    fc_b = jnp.zeros((LANES,), jnp.float32)
    fc_b = fc_b.at[EMB_OFF:EMB_OFF + NUM_FEATURES].set(p["fc_b"])

    # both heads' first Linear concatenated along the output axis -> (128, 1024)
    w1 = jnp.zeros((LANES, 2 * HIDDEN), jnp.float32)
    w1 = w1.at[EMB_OFF:EMB_OFF + NUM_FEATURES, :].set(
        jnp.concatenate([p["mat_w1"], p["sub_w1"]], axis=1))
    b1 = jnp.concatenate([p["mat_b1"], p["sub_b1"]])
    gamma = jnp.concatenate([p["mat_gamma"], p["sub_gamma"]])
    beta = jnp.concatenate([p["mat_beta"], p["sub_beta"]])
    vecs_1024 = jnp.stack([b1, gamma, beta])                                 # (3, 1024)

    # both heads' second Linear as a block-diagonal (1024, 128) matrix
    w2 = jnp.zeros((2 * HIDDEN, LANES), jnp.float32)
    w2 = w2.at[:HIDDEN, MAT_OFF:MAT_OFF + NUM_MATERIALS].set(p["mat_w2"])
    w2 = w2.at[HIDDEN:, SUB_OFF:SUB_OFF + NUM_SUBSTANCES].set(p["sub_w2"])
    b2 = jnp.zeros((LANES,), jnp.float32)
    b2 = b2.at[MAT_OFF:MAT_OFF + NUM_MATERIALS].set(p["mat_b2"])
    b2 = b2.at[SUB_OFF:SUB_OFF + NUM_SUBSTANCES].set(p["sub_b2"])

    vecs_128 = jnp.stack([conv_b, fc_b, b2])                                 # (3, 128)

    # global average pool as a matmul: block-diagonal (B, B*H*W) of 1/(H*W)
    pool = jnp.kron(jnp.eye(B, dtype=jnp.float32),
                    jnp.full((1, H * W), 1.0 / (H * W), jnp.float32))

    return dict(conv_w=conv_w, pool=pool, fc_w=fc_w, w1=w1,
                vecs_1024=vecs_1024, w2=w2, vecs_128=vecs_128)


# ---------------- pure-JAX reference (for a sanity check) ----------------
def reference_forward(x_nchw, p):
    x = jnp.transpose(x_nchw, (0, 2, 3, 1))
    patches = im2col(x).reshape(B, H * W, K_IM2COL)
    cw = jnp.transpose(p["conv_w"], (2, 3, 1, 0)).reshape(K_IM2COL, COUT)
    y = jnp.maximum(jnp.einsum("bpk,kc->bpc", patches, cw) + p["conv_b"], 0.0)
    feats = jnp.mean(y, axis=1)                                              # (B, COUT)
    emb = jnp.maximum(feats @ p["fc_w"] + p["fc_b"], 0.0)

    def head(w1, b1, g, bt, w2, b2):
        h = emb @ w1 + b1
        m = jnp.mean(h, axis=0, keepdims=True)
        v = jnp.mean((h - m) ** 2, axis=0, keepdims=True)
        hn = jnp.maximum((h - m) * jax.lax.rsqrt(v + BN_EPS) * g + bt, 0.0)
        return hn @ w2 + b2

    mat = head(p["mat_w1"], p["mat_b1"], p["mat_gamma"], p["mat_beta"], p["mat_w2"], p["mat_b2"])
    sub = head(p["sub_w1"], p["sub_b1"], p["sub_gamma"], p["sub_beta"], p["sub_w2"], p["sub_b2"])
    return mat, sub, emb


if __name__ == "__main__":
    key = jax.random.PRNGKey(0)
    kx, kp = jax.random.split(key)

    # PyTorch-style NCHW input, input_size=4 channels
    x = jax.random.normal(kx, (B, CIN, H, W), jnp.float32)
    params = init_params(kp)
    packed_params = pack_params(params)           # host-side, once

    pred_mat, pred_sub, emb = jax.jit(fl_model_forward)(x, packed_params)
    jax.block_until_ready((pred_mat, pred_sub, emb))

    assert pred_mat.shape == (B, NUM_MATERIALS)
    assert pred_sub.shape == (B, NUM_SUBSTANCES)
    assert emb.shape == (B, NUM_FEATURES)
    assert jnp.all(jnp.isfinite(pred_mat)) and jnp.all(jnp.isfinite(pred_sub)) and jnp.all(jnp.isfinite(emb))

    r_mat, r_sub, r_emb = reference_forward(x, params)
    assert jnp.allclose(pred_mat, r_mat, rtol=1e-2, atol=1e-2)
    assert jnp.allclose(pred_sub, r_sub, rtol=1e-2, atol=1e-2)
    assert jnp.allclose(emb, r_emb, rtol=1e-2, atol=1e-2)

    print("KERNEL_OK")
</pallas_src>

<mosaic_0001>
module attributes {stable_mosaic.version = 11 : i64} {
  func.func @fused_forward_kernel(%arg0: i32, %arg1: memref<512x36xf32, #tpu.memory_space<vmem>>, %arg2: memref<36x128xf32, #tpu.memory_space<vmem>>, %arg3: memref<2x512xf32, #tpu.memory_space<vmem>>, %arg4: memref<128x128xf32, #tpu.memory_space<vmem>>, %arg5: memref<128x1024xf32, #tpu.memory_space<vmem>>, %arg6: memref<3x1024xf32, #tpu.memory_space<vmem>>, %arg7: memref<1024x128xf32, #tpu.memory_space<vmem>>, %arg8: memref<3x128xf32, #tpu.memory_space<vmem>>, %arg9: memref<2x128xf32, #tpu.memory_space<vmem>>) attributes {dimension_semantics = [#tpu.dimension_semantics<arbitrary>], iteration_bounds = array<i64: 1>, scalar_prefetch = 0 : i64, scratch_operands = 0 : i64, tpu.core_type = #tpu.core_type<tc>, window_params = [{pipeline_mode = #tpu.pipeline_mode<synchronous>, transform_indices = @transform_0, window_bounds = array<i64: 512, 36>}, {pipeline_mode = #tpu.pipeline_mode<synchronous>, transform_indices = @transform_1, window_bounds = array<i64: 36, 128>}, {pipeline_mode = #tpu.pipeline_mode<synchronous>, transform_indices = @transform_2, window_bounds = array<i64: 2, 512>}, {pipeline_mode = #tpu.pipeline_mode<synchronous>, transform_indices = @transform_3, window_bounds = array<i64: 128, 128>}, {pipeline_mode = #tpu.pipeline_mode<synchronous>, transform_indices = @transform_4, window_bounds = array<i64: 128, 1024>}, {pipeline_mode = #tpu.pipeline_mode<synchronous>, transform_indices = @transform_5, window_bounds = array<i64: 3, 1024>}, {pipeline_mode = #tpu.pipeline_mode<synchronous>, transform_indices = @transform_6, window_bounds = array<i64: 1024, 128>}, {pipeline_mode = #tpu.pipeline_mode<synchronous>, transform_indices = @transform_7, window_bounds = array<i64: 3, 128>}, {pipeline_mode = #tpu.pipeline_mode<synchronous>, transform_indices = @transform_8, window_bounds = array<i64: 2, 128>}]} {
    %c0 = arith.constant 0 : index
    %c0_0 = arith.constant 0 : index
    %0 = vector.load %arg8[%c0, %c0_0] : memref<3x128xf32, #tpu.memory_space<vmem>>, vector<3x128xf32>
    %c0_1 = arith.constant 0 : index
    %c0_2 = arith.constant 0 : index
    %1 = vector.load %arg6[%c0_1, %c0_2] : memref<3x1024xf32, #tpu.memory_space<vmem>>, vector<3x1024xf32>
    %c0_3 = arith.constant 0 : index
    %c0_4 = arith.constant 0 : index
    %2 = vector.load %arg1[%c0_3, %c0_4] : memref<512x36xf32, #tpu.memory_space<vmem>>, vector<512x36xf32>
    %c0_5 = arith.constant 0 : index
    %c0_6 = arith.constant 0 : index
    %3 = vector.load %arg2[%c0_5, %c0_6] : memref<36x128xf32, #tpu.memory_space<vmem>>, vector<36x128xf32>
    %cst = arith.constant dense<0.000000e+00> : vector<512x128xf32>
    %4 = tpu.matmul %2, %3, %cst {dimension_numbers = #tpu.dot_dimension_numbers<[1], [0], [0], [1], [0, 0, 1, 1], [], []>} : vector<512x36xf32>, vector<36x128xf32>, vector<512x128xf32> -> vector<512x128xf32>
    %5 = vector.extract_strided_slice %0 {offsets = [0, 0], sizes = [1, 128], strides = [1, 1]} : vector<3x128xf32> to vector<1x128xf32>
    %6 = vector.broadcast %5 : vector<1x128xf32> to vector<512x128xf32>
    %7 = arith.addf %4, %6 : vector<512x128xf32>
    %cst_7 = arith.constant 0.000000e+00 : f32
    %8 = vector.broadcast %cst_7 : f32 to vector<512x128xf32>
    %9 = arith.maximumf %7, %8 : vector<512x128xf32>
    %c0_8 = arith.constant 0 : index
    %c0_9 = arith.constant 0 : index
    %10 = vector.load %arg3[%c0_8, %c0_9] : memref<2x512xf32, #tpu.memory_space<vmem>>, vector<2x512xf32>
    %cst_10 = arith.constant dense<0.000000e+00> : vector<2x128xf32>
    %11 = tpu.matmul %10, %9, %cst_10 {dimension_numbers = #tpu.dot_dimension_numbers<[1], [0], [0], [1], [0, 0, 1, 1], [], []>} : vector<2x512xf32>, vector<512x128xf32>, vector<2x128xf32> -> vector<2x128xf32>
    %c0_11 = arith.constant 0 : index
    %c0_12 = arith.constant 0 : index
    %12 = vector.load %arg4[%c0_11, %c0_12] : memref<128x128xf32, #tpu.memory_space<vmem>>, vector<128x128xf32>
    %cst_13 = arith.constant dense<0.000000e+00> : vector<2x128xf32>
    %13 = tpu.matmul %11, %12, %cst_13 {dimension_numbers = #tpu.dot_dimension_numbers<[1], [0], [0], [1], [0, 0, 1, 1], [], []>} : vector<2x128xf32>, vector<128x128xf32>, vector<2x128xf32> -> vector<2x128xf32>
    %14 = vector.extract_strided_slice %0 {offsets = [1, 0], sizes = [1, 128], strides = [1, 1]} : vector<3x128xf32> to vector<1x128xf32>
    %15 = vector.broadcast %14 : vector<1x128xf32> to vector<2x128xf32>
    %16 = arith.addf %13, %15 : vector<2x128xf32>
    %cst_14 = arith.constant 0.000000e+00 : f32
    %17 = vector.broadcast %cst_14 : f32 to vector<2x128xf32>
    %18 = arith.maximumf %16, %17 : vector<2x128xf32>
    %c0_15 = arith.constant 0 : index
    %c0_16 = arith.constant 0 : index
    %19 = vector.load %arg5[%c0_15, %c0_16] : memref<128x1024xf32, #tpu.memory_space<vmem>>, vector<128x1024xf32>
    %cst_17 = arith.constant dense<0.000000e+00> : vector<2x1024xf32>
    %20 = tpu.matmul %18, %19, %cst_17 {dimension_numbers = #tpu.dot_dimension_numbers<[1], [0], [0], [1], [0, 0, 1, 1], [], []>} : vector<2x128xf32>, vector<128x1024xf32>, vector<2x1024xf32> -> vector<2x1024xf32>
    %21 = vector.extract_strided_slice %1 {offsets = [0, 0], sizes = [1, 1024], strides = [1, 1]} : vector<3x1024xf32> to vector<1x1024xf32>
    %22 = vector.broadcast %21 : vector<1x1024xf32> to vector<2x1024xf32>
    %23 = arith.addf %20, %22 : vector<2x1024xf32>
    %cst_18 = arith.constant dense<0.000000e+00> : vector<1024xf32>
    %24 = vector.multi_reduction <add>, %23, %cst_18 [0] : vector<2x1024xf32> to vector<1024xf32>
    %25 = vector.shape_cast %24 : vector<1024xf32> to vector<1x1024xf32>
    %cst_19 = arith.constant 2.000000e+00 : f32
    %26 = vector.broadcast %cst_19 : f32 to vector<1x1024xf32>
    %27 = arith.divf %25, %26 : vector<1x1024xf32>
    %28 = vector.broadcast %27 : vector<1x1024xf32> to vector<2x1024xf32>
    %29 = arith.subf %23, %28 : vector<2x1024xf32>
    %30 = arith.mulf %29, %29 : vector<2x1024xf32>
    %cst_20 = arith.constant dense<0.000000e+00> : vector<1024xf32>
    %31 = vector.multi_reduction <add>, %30, %cst_20 [0] : vector<2x1024xf32> to vector<1024xf32>
    %32 = vector.shape_cast %31 : vector<1024xf32> to vector<1x1024xf32>
    %cst_21 = arith.constant 2.000000e+00 : f32
    %33 = vector.broadcast %cst_21 : f32 to vector<1x1024xf32>
    %34 = arith.divf %32, %33 : vector<1x1024xf32>
    %35 = vector.broadcast %27 : vector<1x1024xf32> to vector<2x1024xf32>
    %36 = arith.subf %23, %35 : vector<2x1024xf32>
    %cst_22 = arith.constant 9.99999974E-6 : f32
    %37 = vector.broadcast %cst_22 : f32 to vector<1x1024xf32>
    %38 = arith.addf %34, %37 : vector<1x1024xf32>
    %39 = math.rsqrt %38 : vector<1x1024xf32>
    %40 = vector.broadcast %39 : vector<1x1024xf32> to vector<2x1024xf32>
    %41 = arith.mulf %36, %40 : vector<2x1024xf32>
    %42 = vector.extract_strided_slice %1 {offsets = [1, 0], sizes = [1, 1024], strides = [1, 1]} : vector<3x1024xf32> to vector<1x1024xf32>
    %43 = vector.broadcast %42 : vector<1x1024xf32> to vector<2x1024xf32>
    %44 = arith.mulf %41, %43 : vector<2x1024xf32>
    %45 = vector.extract_strided_slice %1 {offsets = [2, 0], sizes = [1, 1024], strides = [1, 1]} : vector<3x1024xf32> to vector<1x1024xf32>
    %46 = vector.broadcast %45 : vector<1x1024xf32> to vector<2x1024xf32>
    %47 = arith.addf %44, %46 : vector<2x1024xf32>
    %cst_23 = arith.constant 0.000000e+00 : f32
    %48 = vector.broadcast %cst_23 : f32 to vector<2x1024xf32>
    %49 = arith.maximumf %47, %48 : vector<2x1024xf32>
    %c0_24 = arith.constant 0 : index
    %c0_25 = arith.constant 0 : index
    %50 = vector.load %arg7[%c0_24, %c0_25] : memref<1024x128xf32, #tpu.memory_space<vmem>>, vector<1024x128xf32>
    %cst_26 = arith.constant dense<0.000000e+00> : vector<2x128xf32>
    %51 = tpu.matmul %49, %50, %cst_26 {dimension_numbers = #tpu.dot_dimension_numbers<[1], [0], [0], [1], [0, 0, 1, 1], [], []>} : vector<2x1024xf32>, vector<1024x128xf32>, vector<2x128xf32> -> vector<2x128xf32>
    %52 = vector.extract_strided_slice %0 {offsets = [2, 0], sizes = [1, 128], strides = [1, 1]} : vector<3x128xf32> to vector<1x128xf32>
    %53 = vector.broadcast %52 : vector<1x128xf32> to vector<2x128xf32>
    %54 = arith.addf %51, %53 : vector<2x128xf32>
    %55 = arith.addf %54, %18 : vector<2x128xf32>
    %c0_27 = arith.constant 0 : index
    %c0_28 = arith.constant 0 : index
    %56 = vector.load %arg9[%c0_27, %c0_28] : memref<2x128xf32, #tpu.memory_space<vmem>>, vector<2x128xf32>
    tpu.vector_store %arg9[%c0_27, %c0_28], %55 {strides = array<i32>} : memref<2x128xf32, #tpu.memory_space<vmem>>, vector<2x128xf32>,
    return
  }
  func.func @transform_0(%arg0: i32) -> (i32, i32) {
    %c0_i32 = arith.constant 0 : i32
    %c0_i32_0 = arith.constant 0 : i32
    %c0_i32_1 = arith.constant 0 : i32
    return %c0_i32, %c0_i32_0 : i32, i32
  }
  func.func @transform_1(%arg0: i32) -> (i32, i32) {
    %c0_i32 = arith.constant 0 : i32
    %c0_i32_0 = arith.constant 0 : i32
    %c0_i32_1 = arith.constant 0 : i32
    return %c0_i32, %c0_i32_0 : i32, i32
  }
  func.func @transform_2(%arg0: i32) -> (i32, i32) {
    %c0_i32 = arith.constant 0 : i32
    %c0_i32_0 = arith.constant 0 : i32
    %c0_i32_1 = arith.constant 0 : i32
    return %c0_i32, %c0_i32_0 : i32, i32
  }
  func.func @transform_3(%arg0: i32) -> (i32, i32) {
    %c0_i32 = arith.constant 0 : i32
    %c0_i32_0 = arith.constant 0 : i32
    %c0_i32_1 = arith.constant 0 : i32
    return %c0_i32, %c0_i32_0 : i32, i32
  }
  func.func @transform_4(%arg0: i32) -> (i32, i32) {
    %c0_i32 = arith.constant 0 : i32
    %c0_i32_0 = arith.constant 0 : i32
    %c0_i32_1 = arith.constant 0 : i32
    return %c0_i32, %c0_i32_0 : i32, i32
  }
  func.func @transform_5(%arg0: i32) -> (i32, i32) {
    %c0_i32 = arith.constant 0 : i32
    %c0_i32_0 = arith.constant 0 : i32
    %c0_i32_1 = arith.constant 0 : i32
    return %c0_i32, %c0_i32_0 : i32, i32
  }
  func.func @transform_6(%arg0: i32) -> (i32, i32) {
    %c0_i32 = arith.constant 0 : i32
    %c0_i32_0 = arith.constant 0 : i32
    %c0_i32_1 = arith.constant 0 : i32
    return %c0_i32, %c0_i32_0 : i32, i32
  }
  func.func @transform_7(%arg0: i32) -> (i32, i32) {
    %c0_i32 = arith.constant 0 : i32
    %c0_i32_0 = arith.constant 0 : i32
    %c0_i32_1 = arith.constant 0 : i32
    return %c0_i32, %c0_i32_0 : i32, i32
  }
  func.func @transform_8(%arg0: i32) -> (i32, i32) {
    %c0_i32 = arith.constant 0 : i32
    %c0_i32_0 = arith.constant 0 : i32
    %c0_i32_1 = arith.constant 0 : i32
    return %c0_i32, %c0_i32_0 : i32, i32
  }
}

</mosaic_0001>

<llo_original>
// kernel: fl_model_forward.1
$region0: #{fl_model_forward.1}
  #allocation0 [shape = 'u32[]', space=smem, size = 0x4, offset = 0x4, fixed_abs, tag = 'smem constant byte address 0x4 - core index']
  #allocation1 [shape = 'u32[144,128]{1,0:T(1,128)}', space=vmem, size = 0x12000, scoped, tag = 'internal scratch']
  %s0 = inlined_call_operand.vmem [shape: f32[512,36], index: 0, kind: input, shape index: {}]
  %s1 = inlined_call_operand.vmem [shape: f32[36,128], index: 1, kind: input, shape index: {}]
  %s2 = inlined_call_operand.vmem [shape: f32[2,512], index: 2, kind: input, shape index: {}]
  %s3 = inlined_call_operand.vmem [shape: f32[128,128], index: 3, kind: input, shape index: {}]
  %s4 = inlined_call_operand.vmem [shape: f32[128,1024], index: 4, kind: input, shape index: {}]
  %s5 = inlined_call_operand.vmem [shape: f32[3,1024], index: 5, kind: input, shape index: {}]
  %s6 = inlined_call_operand.vmem [shape: f32[1024,128], index: 6, kind: input, shape index: {}]
  %s7 = inlined_call_operand.vmem [shape: f32[3,128], index: 7, kind: input, shape index: {}]
  %s8 = inlined_call_operand.vmem [shape: f32[2,128], index: 8, kind: output, shape index: {}]
  %s9 = sld [smem:[#allocation0]]
  $region42: #{fl_model_forward.1} parent=0
    _
  %s11 = ssub.s32 1, %s9
  %s12 = scalar_select 0, %s11, %s9
  // Predicated region
  $region2: #{fl_model_forward.1} parent=0 // pred_check
    _
  $region3: #{fl_model_forward.1} parent=0 // pred_check_branch
    %14 = sbr.rel (0) target = $region5
  $region4: #{fl_model_forward.1} parent=0 // pred_region
    _
  $region5: #{fl_model_forward.1} parent=0 // pred_fallthru
    _
  // Predicated region
  $region6: #{fl_model_forward.1} parent=0 // pred_check
    _
  $region7: #{fl_model_forward.1} parent=0 // pred_check_branch
    %16 = sbr.rel (0) target = $region9
  $region8: #{fl_model_forward.1} parent=0 // pred_region
    _
  $region9: #{fl_model_forward.1} parent=0 // pred_fallthru
    _
  // Predicated region
  $region10: #{fl_model_forward.1} parent=0 // pred_check
    _
  $region11: #{fl_model_forward.1} parent=0 // pred_check_branch
    %18 = sbr.rel (0) target = $region13
  $region12: #{fl_model_forward.1} parent=0 // pred_region
    _
  $region13: #{fl_model_forward.1} parent=0 // pred_fallthru
    _
  // Predicated region
  $region14: #{fl_model_forward.1} parent=0 // pred_check
    _
  $region15: #{fl_model_forward.1} parent=0 // pred_check_branch
    %20 = sbr.rel (0) target = $region17
  $region16: #{fl_model_forward.1} parent=0 // pred_region
    _
  $region17: #{fl_model_forward.1} parent=0 // pred_fallthru
    _
  // Predicated region
  $region18: #{fl_model_forward.1} parent=0 // pred_check
    _
  $region19: #{fl_model_forward.1} parent=0 // pred_check_branch
    %22 = sbr.rel (0) target = $region21
  $region20: #{fl_model_forward.1} parent=0 // pred_region
    _
  $region21: #{fl_model_forward.1} parent=0 // pred_fallthru
    _
  // Predicated region
  $region22: #{fl_model_forward.1} parent=0 // pred_check
    _
  $region23: #{fl_model_forward.1} parent=0 // pred_check_branch
    %24 = sbr.rel (0) target = $region25
  $region24: #{fl_model_forward.1} parent=0 // pred_region
    _
  $region25: #{fl_model_forward.1} parent=0 // pred_fallthru
    _
  // Predicated region
  $region26: #{fl_model_forward.1} parent=0 // pred_check
    _
  $region27: #{fl_model_forward.1} parent=0 // pred_check_branch
    %26 = sbr.rel (0) target = $region29
  $region28: #{fl_model_forward.1} parent=0 // pred_region
    _
  $region29: #{fl_model_forward.1} parent=0 // pred_fallthru
    _
  // Predicated region
  $region30: #{fl_model_forward.1} parent=0 // pred_check
    _
  $region31: #{fl_model_forward.1} parent=0 // pred_check_branch
    %28 = sbr.rel (0) target = $region33
  $region32: #{fl_model_forward.1} parent=0 // pred_region
    _
  $region33: #{fl_model_forward.1} parent=0 // pred_fallthru
    _
  %v29 = vld [vmem:[%s7] sm:$0x7]
  %v30 = vld [vmem:[%s5] sm:$0x77]
  %v31 = vld [vmem:[%s5 + $0x8] sm:$0x77]
  %v32 = vld [vmem:[%s5 + $0x10] sm:$0x77]
  %v33 = vld [vmem:[%s5 + $0x18] sm:$0x77]
  %v34 = vld [vmem:[%s0] sm:$0xff]
  %v35 = vld [vmem:[%s0 + $0x8] sm:$0xff]
  %v36 = vld [vmem:[%s0 + $0x10] sm:$0xff]
  %v37 = vld [vmem:[%s0 + $0x18] sm:$0xff]
  %v38 = vld [vmem:[%s0 + $0x20] sm:$0xff]
  %v39 = vld [vmem:[%s0 + $0x28] sm:$0xff]
  %v40 = vld [vmem:[%s0 + $0x30] sm:$0xff]
  %v41 = vld [vmem:[%s0 + $0x38] sm:$0xff]
  %v42 = vld [vmem:[%s0 + $0x40] sm:$0xff]
  %v43 = vld [vmem:[%s0 + $0x48] sm:$0xff]
  %v44 = vld [vmem:[%s0 + $0x50] sm:$0xff]
  %v45 = vld [vmem:[%s0 + $0x58] sm:$0xff]
  %v46 = vld [vmem:[%s0 + $0x60] sm:$0xff]
  %v47 = vld [vmem:[%s0 + $0x68] sm:$0xff]
  %v48 = vld [vmem:[%s0 + $0x70] sm:$0xff]
  %v49 = vld [vmem:[%s0 + $0x78] sm:$0xff]
  %v50 = vld [vmem:[%s0 + $0x80] sm:$0xff]
  %v51 = vld [vmem:[%s0 + $0x88] sm:$0xff]
  %v52 = vld [vmem:[%s0 + $0x90] sm:$0xff]
  %v53 = vld [vmem:[%s0 + $0x98] sm:$0xff]
  %v54 = vld [vmem:[%s0 + $0xa0] sm:$0xff]
  %v55 = vld [vmem:[%s0 + $0xa8] sm:$0xff]
  %v56 = vld [vmem:[%s0 + $0xb0] sm:$0xff]
  %v57 = vld [vmem:[%s0 + $0xb8] sm:$0xff]
  %v58 = vld [vmem:[%s0 + $0xc0] sm:$0xff]
  %v59 = vld [vmem:[%s0 + $0xc8] sm:$0xff]
  %v60 = vld [vmem:[%s0 + $0xd0] sm:$0xff]
  %v61 = vld [vmem:[%s0 + $0xd8] sm:$0xff]
  %v62 = vld [vmem:[%s0 + $0xe0] sm:$0xff]
  %v63 = vld [vmem:[%s0 + $0xe8] sm:$0xff]
  %v64 = vld [vmem:[%s0 + $0xf0] sm:$0xff]
  %v65 = vld [vmem:[%s0 + $0xf8] sm:$0xff]
  %v66 = vld [vmem:[%s0 + $0x100] sm:$0xff]
  %v67 = vld [vmem:[%s0 + $0x108] sm:$0xff]
  %v68 = vld [vmem:[%s0 + $0x110] sm:$0xff]
  %v69 = vld [vmem:[%s0 + $0x118] sm:$0xff]
  %v70 = vld [vmem:[%s0 + $0x120] sm:$0xff]
  %v71 = vld [vmem:[%s0 + $0x128] sm:$0xff]
  %v72 = vld [vmem:[%s0 + $0x130] sm:$0xff]
  %v73 = vld [vmem:[%s0 + $0x138] sm:$0xff]
  %v74 = vld [vmem:[%s0 + $0x140] sm:$0xff]
  %v75 = vld [vmem:[%s0 + $0x148] sm:$0xff]
  %v76 = vld [vmem:[%s0 + $0x150] sm:$0xff]
  %v77 = vld [vmem:[%s0 + $0x158] sm:$0xff]
  %v78 = vld [vmem:[%s0 + $0x160] sm:$0xff]
  %v79 = vld [vmem:[%s0 + $0x168] sm:$0xff]
  %v80 = vld [vmem:[%s0 + $0x170] sm:$0xff]
  %v81 = vld [vmem:[%s0 + $0x178] sm:$0xff]
  %v82 = vld [vmem:[%s0 + $0x180] sm:$0xff]
  %v83 = vld [vmem:[%s0 + $0x188] sm:$0xff]
  %v84 = vld [vmem:[%s0 + $0x190] sm:$0xff]
  %v85 = vld [vmem:[%s0 + $0x198] sm:$0xff]
  %v86 = vld [vmem:[%s0 + $0x1a0] sm:$0xff]
  %v87 = vld [vmem:[%s0 + $0x1a8] sm:$0xff]
  %v88 = vld [vmem:[%s0 + $0x1b0] sm:$0xff]
  %v89 = vld [vmem:[%s0 + $0x1b8] sm:$0xff]
  %v90 = vld [vmem:[%s0 + $0x1c0] sm:$0xff]
  %v91 = vld [vmem:[%s0 + $0x1c8] sm:$0xff]
  %v92 = vld [vmem:[%s0 + $0x1d0] sm:$0xff]
  %v93 = vld [vmem:[%s0 + $0x1d8] sm:$0xff]
  %v94 = vld [vmem:[%s0 + $0x1e0] sm:$0xff]
  %v95 = vld [vmem:[%s0 + $0x1e8] sm:$0xff]
  %v96 = vld [vmem:[%s0 + $0x1f0] sm:$0xff]
  %v97 = vld [vmem:[%s0 + $0x1f8] sm:$0xff]
  %v98 = vld [vmem:[%s1] sm:$0xff]
  %v99 = vld [vmem:[%s1 + $0x8] sm:$0xff]
  %v100 = vld [vmem:[%s1 + $0x10] sm:$0xff]
  %v101 = vld [vmem:[%s1 + $0x18] sm:$0xff]
  %v102 = vld [vmem:[%s1 + $0x20] sm:$0xf]
  %v103 = vlaneseq
  %v104 = vshrl.u32 %v103, 7
  %v105 = vsub.s32 0, %v104
  %v106 = vrot.slane %v29, %v105
  %vm107 = vcmask 293888
  %v109 = vsel %vm107, %v34, 0
  %v112 = vsel %vm107, %v35, 0
  %v115 = vsel %vm107, %v36, 0
  %v118 = vsel %vm107, %v37, 0
  %v121 = vsel %vm107, %v38, 0
  %v124 = vsel %vm107, %v39, 0
  %v127 = vsel %vm107, %v40, 0
  %v130 = vsel %vm107, %v41, 0
  %v133 = vsel %vm107, %v42, 0
  %v136 = vsel %vm107, %v43, 0
  %v139 = vsel %vm107, %v44, 0
  %v142 = vsel %vm107, %v45, 0
  %v145 = vsel %vm107, %v46, 0
  %v148 = vsel %vm107, %v47, 0
  %v151 = vsel %vm107, %v48, 0
  %v154 = vsel %vm107, %v49, 0
  %v157 = vsel %vm107, %v50, 0
  %v160 = vsel %vm107, %v51, 0
  %v163 = vsel %vm107, %v52, 0
  %v166 = vsel %vm107, %v53, 0
  %v169 = vsel %vm107, %v54, 0
  %v172 = vsel %vm107, %v55, 0
  %v175 = vsel %vm107, %v56, 0
  %v178 = vsel %vm107, %v57, 0
  %v181 = vsel %vm107, %v58, 0
  %v184 = vsel %vm107, %v59, 0
  %v187 = vsel %vm107, %v60, 0
  %v190 = vsel %vm107, %v61, 0
  %v193 = vsel %vm107, %v62, 0
  %v196 = vsel %vm107, %v63, 0
  %v199 = vsel %vm107, %v64, 0
  %v202 = vsel %vm107, %v65, 0
  %v205 = vsel %vm107, %v66, 0
  %v208 = vsel %vm107, %v67, 0
  %v211 = vsel %vm107, %v68, 0
  %v214 = vsel %vm107, %v69, 0
  %v217 = vsel %vm107, %v70, 0
  %v220 = vsel %vm107, %v71, 0
  %v223 = vsel %vm107, %v72, 0
  %v226 = vsel %vm107, %v73, 0
  %v229 = vsel %vm107, %v74, 0
  %v232 = vsel %vm107, %v75, 0
  %v235 = vsel %vm107, %v76, 0
  %v238 = vsel %vm107, %v77, 0
  %v241 = vsel %vm107, %v78, 0
  %v244 = vsel %vm107, %v79, 0
  %v247 = vsel %vm107, %v80, 0
  %v250 = vsel %vm107, %v81, 0
  %v253 = vsel %vm107, %v82, 0
  %v256 = vsel %vm107, %v83, 0
  %v259 = vsel %vm107, %v84, 0
  %v262 = vsel %vm107, %v85, 0
  %v265 = vsel %vm107, %v86, 0
  %v268 = vsel %vm107, %v87, 0
  %v271 = vsel %vm107, %v88, 0
  %v274 = vsel %vm107, %v89, 0
  %v277 = vsel %vm107, %v90, 0
  %v280 = vsel %vm107, %v91, 0
  %v283 = vsel %vm107, %v92, 0
  %v286 = vsel %vm107, %v93, 0
  %v289 = vsel %vm107, %v94, 0
  %v292 = vsel %vm107, %v95, 0
  %v295 = vsel %vm107, %v96, 0
  %v298 = vsel %vm107, %v97, 0
  %vm300 = vcmask 1043456
  %v302 = vsel %vm300, %v102, 0
  %304 = vmatprep.subr.mxu0 0.0
  %305 = vmatpush1.msra.mxu0 %v98
  %306 = vmatprep.subr.mxu0 0.0
  %307 = vmatpush1.msra.mxu0 %v99
  %308 = vmatprep.subr.mxu0 0.0
  %309 = vmatpush1.msra.mxu0 %v100
  %310 = vmatprep.subr.mxu0 0.0
  %311 = vmatpush1.msra.mxu0 %v101
  %312 = vmatprep.subr.mxu0 0.0
  %313 = vmatpush1.msra.mxu0 %v302
  %314 = vmatprep.subr.mxu0 0.0
  %315 = vmatpush1.msra.mxu0 0.0
  %316 = vmatprep.subr.mxu0 0.0
  %317 = vmatpush1.msra.mxu0 0.0
  %318 = vmatprep.subr.mxu0 0.0
  %319 = vmatpush1.msra.mxu0 0.0
  %320 = vmatprep.subr.mxu0 0.0
  %321 = vmatpush1.msra.mxu0 0.0
  %322 = vmatprep.subr.mxu0 0.0
  %323 = vmatpush1.msra.mxu0 0.0
  %324 = vmatprep.subr.mxu0 0.0
  %325 = vmatpush1.msra.mxu0 0.0
  %326 = vmatprep.subr.mxu0 0.0
  %327 = vmatpush1.msra.mxu0 0.0
  %328 = vmatprep.subr.mxu0 0.0
  %329 = vmatpush1.msra.mxu0 0.0
  %330 = vmatprep.subr.mxu0 0.0
  %331 = vmatpush1.msra.mxu0 0.0
  %332 = vmatprep.subr.mxu0 0.0
  %333 = vmatpush1.msra.mxu0 0.0
  %334 = vmatprep.subr.mxu0 0.0
  %335 = vmatpush1.msra.mxu0 0.0
  %336 = vmatprep.subr.mxu0 0.0
  %337 = vmatpush1.msra.mxu0 0.0
  %338 = vmatprep.subr.mxu0 0.0
  %339 = vmatpush1.msra.mxu0 0.0
  %340 = vmatprep.subr.mxu0 0.0
  %341 = vmatpush1.msra.mxu0 0.0
  %342 = vmatprep.subr.mxu0 0.0
  %343 = vmatpush1.msra.mxu0 0.0
  %344 = vmatprep.subr.mxu0 0.0
  %345 = vmatpush1.msra.mxu0 0.0
  %346 = vmatprep.subr.mxu0 0.0
  %347 = vmatpush1.msra.mxu0 0.0
  %348 = vmatprep.subr.mxu0 0.0
  %349 = vmatpush1.msra.mxu0 0.0
  %350 = vmatprep.subr.mxu0 0.0
  %351 = vmatpush1.msra.mxu0 0.0
  %352 = vmatprep.subr.mxu0 0.0
  %353 = vmatpush1.msra.mxu0 0.0
  %354 = vmatprep.subr.mxu0 0.0
  %355 = vmatpush1.msra.mxu0 0.0
  %356 = vmatprep.subr.mxu0 0.0
  %357 = vmatpush1.msra.mxu0 0.0
  %358 = vmatprep.subr.mxu0 0.0
  %359 = vmatpush1.msra.mxu0 0.0
  %360 = vmatprep.subr.mxu0 0.0
  %361 = vmatpush1.msra.mxu0 0.0
  %362 = vmatprep.subr.mxu0 0.0
  %363 = vmatpush1.msra.mxu0 0.0
  %364 = vmatprep.subr.mxu0 0.0
  %365 = vmatpush1.msra.mxu0 0.0
  %366 = vmatprep.subr.mxu0 0.0
  %367 = vmatpush1.msra.mxu0 0.0
  %368 = vmatprep.mubr.f32.mxu0 0.0
  %369 = vmatmul.mubr.f32.gmra.mrb[0].mxu0 %v109
  %v370 = vpop.f32.mrb[0].mxu0
  %v371 = vadd.f32 %v106, %v370
  %v372 = vpop.f32.mrb[0].mxu0
  %373 = vmatprep.mubr.f32.mxu0 0.0
  %374 = vmatmul.mubr.f32.gmra.mrb[0].mxu0 %v112
  %v375 = vpop.f32.mrb[0].mxu0
  %v376 = vadd.f32 %v106, %v375
  %v377 = vpop.f32.mrb[0].mxu0
  %378 = vmatprep.mubr.f32.mxu0 0.0
  %379 = vmatmul.mubr.f32.gmra.mrb[0].mxu0 %v115
  %v380 = vpop.f32.mrb[0].mxu0
  %v381 = vadd.f32 %v106, %v380
  %v382 = vpop.f32.mrb[0].mxu0
  %383 = vmatprep.mubr.f32.mxu0 0.0
  %384 = vmatmul.mubr.f32.gmra.mrb[0].mxu0 %v118
  %v385 = vpop.f32.mrb[0].mxu0
  %v386 = vadd.f32 %v106, %v385
  %v387 = vpop.f32.mrb[0].mxu0
  %388 = vmatprep.mubr.f32.mxu0 0.0
  %389 = vmatmul.mubr.f32.gmra.mrb[0].mxu0 %v121
  %v390 = vpop.f32.mrb[0].mxu0
  %v391 = vadd.f32 %v106, %v390
  %v392 = vpop.f32.mrb[0].mxu0
  %393 = vmatprep.mubr.f32.mxu0 0.0
  %394 = vmatmul.mubr.f32.gmra.mrb[0].mxu0 %v124
  %v395 = vpop.f32.mrb[0].mxu0
  %v396 = vadd.f32 %v106, %v395
  %v397 = vpop.f32.mrb[0].mxu0
  %398 = vmatprep.mubr.f32.mxu0 0.0
  %399 = vmatmul.mubr.f32.gmra.mrb[0].mxu0 %v127
  %v400 = vpop.f32.mrb[0].mxu0
  %v401 = vadd.f32 %v106, %v400
  %v402 = vpop.f32.mrb[0].mxu0
  %403 = vmatprep.mubr.f32.mxu0 0.0
  %404 = vmatmul.mubr.f32.gmra.mrb[0].mxu0 %v130
  %v405 = vpop.f32.mrb[0].mxu0
  %v406 = vadd.f32 %v106, %v405
  %v407 = vpop.f32.mrb[0].mxu0
  %408 = vmatprep.mubr.f32.mxu0 0.0
  %409 = vmatmul.mubr.f32.gmra.mrb[0].mxu0 %v133
  %v410 = vpop.f32.mrb[0].mxu0
  %v411 = vadd.f32 %v106, %v410
  %v412 = vpop.f32.mrb[0].mxu0
  %413 = vmatprep.mubr.f32.mxu0 0.0
  %414 = vmatmul.mubr.f32.gmra.mrb[0].mxu0 %v136
  %v415 = vpop.f32.mrb[0].mxu0
  %v416 = vadd.f32 %v106, %v415
  %v417 = vpop.f32.mrb[0].mxu0
  %418 = vmatprep.mubr.f32.mxu0 0.0
  %419 = vmatmul.mubr.f32.gmra.mrb[0].mxu0 %v139
  %v420 = vpop.f32.mrb[0].mxu0
  %v421 = vadd.f32 %v106, %v420
  %v422 = vpop.f32.mrb[0].mxu0
  %423 = vmatprep.mubr.f32.mxu0 0.0
  %424 = vmatmul.mubr.f32.gmra.mrb[0].mxu0 %v142
  %v425 = vpop.f32.mrb[0].mxu0
  %v426 = vadd.f32 %v106, %v425
  %v427 = vpop.f32.mrb[0].mxu0
  %428 = vmatprep.mubr.f32.mxu0 0.0
  %429 = vmatmul.mubr.f32.gmra.mrb[0].mxu0 %v145
  %v430 = vpop.f32.mrb[0].mxu0
  %v431 = vadd.f32 %v106, %v430
  %v432 = vpop.f32.mrb[0].mxu0
  %433 = vmatprep.mubr.f32.mxu0 0.0
  %434 = vmatmul.mubr.f32.gmra.mrb[0].mxu0 %v148
  %v435 = vpop.f32.mrb[0].mxu0
  %v436 = vadd.f32 %v106, %v435
  %v437 = vpop.f32.mrb[0].mxu0
  %438 = vmatprep.mubr.f32.mxu0 0.0
  %439 = vmatmul.mubr.f32.gmra.mrb[0].mxu0 %v151
  %v440 = vpop.f32.mrb[0].mxu0
  %v441 = vadd.f32 %v106, %v440
  %v442 = vpop.f32.mrb[0].mxu0
  %443 = vmatprep.mubr.f32.mxu0 0.0
  %444 = vmatmul.mubr.f32.gmra.mrb[0].mxu0 %v154
  %v445 = vpop.f32.mrb[0].mxu0
  %v446 = vadd.f32 %v106, %v445
  %v447 = vpop.f32.mrb[0].mxu0
  %448 = vmatprep.mubr.f32.mxu0 0.0
  %449 = vmatmul.mubr.f32.gmra.mrb[0].mxu0 %v157
  %v450 = vpop.f32.mrb[0].mxu0
  %v451 = vadd.f32 %v106, %v450
  %v452 = vpop.f32.mrb[0].mxu0
  %453 = vmatprep.mubr.f32.mxu0 0.0
  %454 = vmatmul.mubr.f32.gmra.mrb[0].mxu0 %v160
  %v455 = vpop.f32.mrb[0].mxu0
  %v456 = vadd.f32 %v106, %v455
  %v457 = vpop.f32.mrb[0].mxu0
  %458 = vmatprep.mubr.f32.mxu0 0.0
  %459 = vmatmul.mubr.f32.gmra.mrb[0].mxu0 %v163
  %v460 = vpop.f32.mrb[0].mxu0
  %v461 = vadd.f32 %v106, %v460
  %v462 = vpop.f32.mrb[0].mxu0
  %463 = vmatprep.mubr.f32.mxu0 0.0
  %464 = vmatmul.mubr.f32.gmra.mrb[0].mxu0 %v166
  %v465 = vpop.f32.mrb[0].mxu0
  %v466 = vadd.f32 %v106, %v465
  %v467 = vpop.f32.mrb[0].mxu0
  %468 = vmatprep.mubr.f32.mxu0 0.0
  %469 = vmatmul.mubr.f32.gmra.mrb[0].mxu0 %v169
  %v470 = vpop.f32.mrb[0].mxu0
  %v471 = vadd.f32 %v106, %v470
  %v472 = vpop.f32.mrb[0].mxu0
  %473 = vmatprep.mubr.f32.mxu0 0.0
  %474 = vmatmul.mubr.f32.gmra.mrb[0].mxu0 %v172
  %v475 = vpop.f32.mrb[0].mxu0
  %v476 = vadd.f32 %v106, %v475
  %v477 = vpop.f32.mrb[0].mxu0
  %478 = vmatprep.mubr.f32.mxu0 0.0
  %479 = vmatmul.mubr.f32.gmra.mrb[0].mxu0 %v175
  %v480 = vpop.f32.mrb[0].mxu0
  %v481 = vadd.f32 %v106, %v480
  %v482 = vpop.f32.mrb[0].mxu0
  %483 = vmatprep.mubr.f32.mxu0 0.0
  %484 = vmatmul.mubr.f32.gmra.mrb[0].mxu0 %v178
  %v485 = vpop.f32.mrb[0].mxu0
  %v486 = vadd.f32 %v106, %v485
  %v487 = vpop.f32.mrb[0].mxu0
  %488 = vmatprep.mubr.f32.mxu0 0.0
  %489 = vmatmul.mubr.f32.gmra.mrb[0].mxu0 %v181
  %v490 = vpop.f32.mrb[0].mxu0
  %v491 = vadd.f32 %v106, %v490
  %v492 = vpop.f32.mrb[0].mxu0
  %493 = vmatprep.mubr.f32.mxu0 0.0
  %494 = vmatmul.mubr.f32.gmra.mrb[0].mxu0 %v184
  %v495 = vpop.f32.mrb[0].mxu0
  %v496 = vadd.f32 %v106, %v495
  %v497 = vpop.f32.mrb[0].mxu0
  %498 = vmatprep.mubr.f32.mxu0 0.0
  %499 = vmatmul.mubr.f32.gmra.mrb[0].mxu0 %v187
  %v500 = vpop.f32.mrb[0].mxu0
  %v501 = vadd.f32 %v106, %v500
  %v502 = vpop.f32.mrb[0].mxu0
  %503 = vmatprep.mubr.f32.mxu0 0.0
  %504 = vmatmul.mubr.f32.gmra.mrb[0].mxu0 %v190
  %v505 = vpop.f32.mrb[0].mxu0
  %v506 = vadd.f32 %v106, %v505
  %v507 = vpop.f32.mrb[0].mxu0
  %508 = vmatprep.mubr.f32.mxu0 0.0
  %509 = vmatmul.mubr.f32.gmra.mrb[0].mxu0 %v193
  %v510 = vpop.f32.mrb[0].mxu0
  %v511 = vadd.f32 %v106, %v510
  %v512 = vpop.f32.mrb[0].mxu0
  %513 = vmatprep.mubr.f32.mxu0 0.0
  %514 = vmatmul.mubr.f32.gmra.mrb[0].mxu0 %v196
  %v515 = vpop.f32.mrb[0].mxu0
  %v516 = vadd.f32 %v106, %v515
  %v517 = vpop.f32.mrb[0].mxu0
  %518 = vmatprep.mubr.f32.mxu0 0.0
  %519 = vmatmul.mubr.f32.gmra.mrb[0].mxu0 %v199
  %v520 = vpop.f32.mrb[0].mxu0
  %v521 = vadd.f32 %v106, %v520
  %v522 = vpop.f32.mrb[0].mxu0
  %523 = vmatprep.mubr.f32.mxu0 0.0
  %524 = vmatmul.mubr.f32.gmra.mrb[0].mxu0 %v202
  %v525 = vpop.f32.mrb[0].mxu0
  %v526 = vadd.f32 %v106, %v525
  %v527 = vpop.f32.mrb[0].mxu0
  %528 = vmatprep.mubr.f32.mxu0 0.0
  %529 = vmatmul.mubr.f32.gmra.mrb[0].mxu0 %v205
  %v530 = vpop.f32.mrb[0].mxu0
  %v531 = vadd.f32 %v106, %v530
  %v532 = vpop.f32.mrb[0].mxu0
  %533 = vmatprep.mubr.f32.mxu0 0.0
  %534 = vmatmul.mubr.f32.gmra.mrb[0].mxu0 %v208
  %v535 = vpop.f32.mrb[0].mxu0
  %v536 = vadd.f32 %v106, %v535
  %v537 = vpop.f32.mrb[0].mxu0
  %538 = vmatprep.mubr.f32.mxu0 0.0
  %539 = vmatmul.mubr.f32.gmra.mrb[0].mxu0 %v211
  %v540 = vpop.f32.mrb[0].mxu0
  %v541 = vadd.f32 %v106, %v540
  %v542 = vpop.f32.mrb[0].mxu0
  %543 = vmatprep.mubr.f32.mxu0 0.0
  %544 = vmatmul.mubr.f32.gmra.mrb[0].mxu0 %v214
  %v545 = vpop.f32.mrb[0].mxu0
  %v546 = vadd.f32 %v106, %v545
  %v547 = vpop.f32.mrb[0].mxu0
  %548 = vmatprep.mubr.f32.mxu0 0.0
  %549 = vmatmul.mubr.f32.gmra.mrb[0].mxu0 %v217
  %v550 = vpop.f32.mrb[0].mxu0
  %v551 = vadd.f32 %v106, %v550
  %v552 = vpop.f32.mrb[0].mxu0
  %553 = vmatprep.mubr.f32.mxu0 0.0
  %554 = vmatmul.mubr.f32.gmra.mrb[0].mxu0 %v220
  %v555 = vpop.f32.mrb[0].mxu0
  %v556 = vadd.f32 %v106, %v555
  %v557 = vpop.f32.mrb[0].mxu0
  %558 = vmatprep.mubr.f32.mxu0 0.0
  %559 = vmatmul.mubr.f32.gmra.mrb[0].mxu0 %v223
  %v560 = vpop.f32.mrb[0].mxu0
  %v561 = vadd.f32 %v106, %v560
  %v562 = vpop.f32.mrb[0].mxu0
  %563 = vmatprep.mubr.f32.mxu0 0.0
  %564 = vmatmul.mubr.f32.gmra.mrb[0].mxu0 %v226
  %v565 = vpop.f32.mrb[0].mxu0
  %v566 = vadd.f32 %v106, %v565
  %v567 = vpop.f32.mrb[0].mxu0
  %568 = vmatprep.mubr.f32.mxu0 0.0
  %569 = vmatmul.mubr.f32.gmra.mrb[0].mxu0 %v229
  %v570 = vpop.f32.mrb[0].mxu0
  %v571 = vadd.f32 %v106, %v570
  %v572 = vpop.f32.mrb[0].mxu0
  %573 = vmatprep.mubr.f32.mxu0 0.0
  %574 = vmatmul.mubr.f32.gmra.mrb[0].mxu0 %v232
  %v575 = vpop.f32.mrb[0].mxu0
  %v576 = vadd.f32 %v106, %v575
  %v577 = vpop.f32.mrb[0].mxu0
  %578 = vmatprep.mubr.f32.mxu0 0.0
  %579 = vmatmul.mubr.f32.gmra.mrb[0].mxu0 %v235
  %v580 = vpop.f32.mrb[0].mxu0
  %v581 = vadd.f32 %v106, %v580
  %v582 = vpop.f32.mrb[0].mxu0
  %583 = vmatprep.mubr.f32.mxu0 0.0
  %584 = vmatmul.mubr.f32.gmra.mrb[0].mxu0 %v238
  %v585 = vpop.f32.mrb[0].mxu0
  %v586 = vadd.f32 %v106, %v585
  %v587 = vpop.f32.mrb[0].mxu0
  %588 = vmatprep.mubr.f32.mxu0 0.0
  %589 = vmatmul.mubr.f32.gmra.mrb[0].mxu0 %v241
  %v590 = vpop.f32.mrb[0].mxu0
  %v591 = vadd.f32 %v106, %v590
  %v592 = vpop.f32.mrb[0].mxu0
  %593 = vmatprep.mubr.f32.mxu0 0.0
  %594 = vmatmul.mubr.f32.gmra.mrb[0].mxu0 %v244
  %v595 = vpop.f32.mrb[0].mxu0
  %v596 = vadd.f32 %v106, %v595
  %v597 = vpop.f32.mrb[0].mxu0
  %598 = vmatprep.mubr.f32.mxu0 0.0
  %599 = vmatmul.mubr.f32.gmra.mrb[0].mxu0 %v247
  %v600 = vpop.f32.mrb[0].mxu0
  %v601 = vadd.f32 %v106, %v600
  %v602 = vpop.f32.mrb[0].mxu0
  %603 = vmatprep.mubr.f32.mxu0 0.0
  %604 = vmatmul.mubr.f32.gmra.mrb[0].mxu0 %v250
  %v605 = vpop.f32.mrb[0].mxu0
  %v606 = vadd.f32 %v106, %v605
  %v607 = vpop.f32.mrb[0].mxu0
  %608 = vmatprep.mubr.f32.mxu0 0.0
  %609 = vmatmul.mubr.f32.gmra.mrb[0].mxu0 %v253
  %v610 = vpop.f32.mrb[0].mxu0
  %v611 = vadd.f32 %v106, %v610
  %v612 = vpop.f32.mrb[0].mxu0
  %613 = vmatprep.mubr.f32.mxu0 0.0
  %614 = vmatmul.mubr.f32.gmra.mrb[0].mxu0 %v256
  %v615 = vpop.f32.mrb[0].mxu0
  %v616 = vadd.f32 %v106, %v615
  %v617 = vpop.f32.mrb[0].mxu0
  %618 = vmatprep.mubr.f32.mxu0 0.0
  %619 = vmatmul.mubr.f32.gmra.mrb[0].mxu0 %v259
  %v620 = vpop.f32.mrb[0].mxu0
  %v621 = vadd.f32 %v106, %v620
  %v622 = vpop.f32.mrb[0].mxu0
  %623 = vmatprep.mubr.f32.mxu0 0.0
  %624 = vmatmul.mubr.f32.gmra.mrb[0].mxu0 %v262
  %v625 = vpop.f32.mrb[0].mxu0
  %v626 = vadd.f32 %v106, %v625
  %v627 = vpop.f32.mrb[0].mxu0
  %628 = vmatprep.mubr.f32.mxu0 0.0
  %629 = vmatmul.mubr.f32.gmra.mrb[0].mxu0 %v265
  %v630 = vpop.f32.mrb[0].mxu0
  %v631 = vadd.f32 %v106, %v630
  %v632 = vpop.f32.mrb[0].mxu0
  %633 = vmatprep.mubr.f32.mxu0 0.0
  %634 = vmatmul.mubr.f32.gmra.mrb[0].mxu0 %v268
  %v635 = vpop.f32.mrb[0].mxu0
  %v636 = vadd.f32 %v106, %v635
  %v637 = vpop.f32.mrb[0].mxu0
  %638 = vmatprep.mubr.f32.mxu0 0.0
  %639 = vmatmul.mubr.f32.gmra.mrb[0].mxu0 %v271
  %v640 = vpop.f32.mrb[0].mxu0
  %v641 = vadd.f32 %v106, %v640
  %v642 = vpop.f32.mrb[0].mxu0
  %643 = vmatprep.mubr.f32.mxu0 0.0
  %644 = vmatmul.mubr.f32.gmra.mrb[0].mxu0 %v274
  %v645 = vpop.f32.mrb[0].mxu0
  %v646 = vadd.f32 %v106, %v645
  %v647 = vpop.f32.mrb[0].mxu0
  %648 = vmatprep.mubr.f32.mxu0 0.0
  %649 = vmatmul.mubr.f32.gmra.mrb[0].mxu0 %v277
  %v650 = vpop.f32.mrb[0].mxu0
  %v651 = vadd.f32 %v106, %v650
  %v652 = vpop.f32.mrb[0].mxu0
  %653 = vmatprep.mubr.f32.mxu0 0.0
  %654 = vmatmul.mubr.f32.gmra.mrb[0].mxu0 %v280
  %v655 = vpop.f32.mrb[0].mxu0
  %v656 = vadd.f32 %v106, %v655
  %v657 = vpop.f32.mrb[0].mxu0
  %658 = vmatprep.mubr.f32.mxu0 0.0
  %659 = vmatmul.mubr.f32.gmra.mrb[0].mxu0 %v283
  %v660 = vpop.f32.mrb[0].mxu0
  %v661 = vadd.f32 %v106, %v660
  %v662 = vpop.f32.mrb[0].mxu0
  %663 = vmatprep.mubr.f32.mxu0 0.0
  %664 = vmatmul.mubr.f32.gmra.mrb[0].mxu0 %v286
  %v665 = vpop.f32.mrb[0].mxu0
  %v666 = vadd.f32 %v106, %v665
  %v667 = vpop.f32.mrb[0].mxu0
  %668 = vmatprep.mubr.f32.mxu0 0.0
  %669 = vmatmul.mubr.f32.gmra.mrb[0].mxu0 %v289
  %v670 = vpop.f32.mrb[0].mxu0
  %v671 = vadd.f32 %v106, %v670
  %v672 = vpop.f32.mrb[0].mxu0
  %673 = vmatprep.mubr.f32.mxu0 0.0
  %674 = vmatmul.mubr.f32.gmra.mrb[0].mxu0 %v292
  %v675 = vpop.f32.mrb[0].mxu0
  %v676 = vadd.f32 %v106, %v675
  %v677 = vpop.f32.mrb[0].mxu0
  %678 = vmatprep.mubr.f32.mxu0 0.0
  %679 = vmatmul.mubr.f32.gmra.mrb[0].mxu0 %v295
  %v680 = vpop.f32.mrb[0].mxu0
  %v681 = vadd.f32 %v106, %v680
  %v682 = vpop.f32.mrb[0].mxu0
  %683 = vmatprep.mubr.f32.mxu0 0.0
  %684 = vmatmul.mubr.f32.gmra.mrb[0].mxu0 %v298
  %v685 = vpop.f32.mrb[0].mxu0
  %v686 = vadd.f32 %v106, %v685
  %v687 = vpop.f32.mrb[0].mxu0
  %688 = vdwg.mxu0
  %v689 = vmax.f32 %v371, 0.0
  %v690 = vmax.f32 %v376, 0.0
  %v691 = vmax.f32 %v381, 0.0
  %v692 = vmax.f32 %v386, 0.0
  %v693 = vmax.f32 %v391, 0.0
  %v694 = vmax.f32 %v396, 0.0
  %v695 = vmax.f32 %v401, 0.0
  %v696 = vmax.f32 %v406, 0.0
  %v697 = vmax.f32 %v411, 0.0
  %v698 = vmax.f32 %v416, 0.0
  %v699 = vmax.f32 %v421, 0.0
  %v700 = vmax.f32 %v426, 0.0
  %v701 = vmax.f32 %v431, 0.0
  %v702 = vmax.f32 %v436, 0.0
  %v703 = vmax.f32 %v441, 0.0
  %v704 = vmax.f32 %v446, 0.0
  %v705 = vmax.f32 %v451, 0.0
  %v706 = vmax.f32 %v456, 0.0
  %v707 = vmax.f32 %v461, 0.0
  %v708 = vmax.f32 %v466, 0.0
  %v709 = vmax.f32 %v471, 0.0
  %v710 = vmax.f32 %v476, 0.0
  %v711 = vmax.f32 %v481, 0.0
  %v712 = vmax.f32 %v486, 0.0
  %v713 = vmax.f32 %v491, 0.0
  %v714 = vmax.f32 %v496, 0.0
  %v715 = vmax.f32 %v501, 0.0
  %v716 = vmax.f32 %v506, 0.0
  %v717 = vmax.f32 %v511, 0.0
  %v718 = vmax.f32 %v516, 0.0
  %v719 = vmax.f32 %v521, 0.0
  %v720 = vmax.f32 %v526, 0.0
  %v721 = vmax.f32 %v531, 0.0
  %v722 = vmax.f32 %v536, 0.0
  %v723 = vmax.f32 %v541, 0.0
  %v724 = vmax.f32 %v546, 0.0
  %v725 = vmax.f32 %v551, 0.0
  %v726 = vmax.f32 %v556, 0.0
  %v727 = vmax.f32 %v561, 0.0
  %v728 = vmax.f32 %v566, 0.0
  %v729 = vmax.f32 %v571, 0.0
  %v730 = vmax.f32 %v576, 0.0
  %v731 = vmax.f32 %v581, 0.0
  %v732 = vmax.f32 %v586, 0.0
  %v733 = vmax.f32 %v591, 0.0
  %v734 = vmax.f32 %v596, 0.0
  %v735 = vmax.f32 %v601, 0.0
  %v736 = vmax.f32 %v606, 0.0
  %v737 = vmax.f32 %v611, 0.0
  %v738 = vmax.f32 %v616, 0.0
  %v739 = vmax.f32 %v621, 0.0
  %v740 = vmax.f32 %v626, 0.0
  %v741 = vmax.f32 %v631, 0.0
  %v742 = vmax.f32 %v636, 0.0
  %v743 = vmax.f32 %v641, 0.0
  %v744 = vmax.f32 %v646, 0.0
  %v745 = vmax.f32 %v651, 0.0
  %v746 = vmax.f32 %v656, 0.0
  %v747 = vmax.f32 %v661, 0.0
  %v748 = vmax.f32 %v666, 0.0
  %v749 = vmax.f32 %v671, 0.0
  %v750 = vmax.f32 %v676, 0.0
  %v751 = vmax.f32 %v681, 0.0
  %v752 = vmax.f32 %v686, 0.0
  %v753 = vld [vmem:[%s2] sm:$0xff]
  %v755 = vcombine.high %v753, %v753
  %v757 = vunpack.c.l.s4 1983009808
  %v758 = vunpack.c.0.s8 %v757
  %v759 = vlaneseq
  %v760 = vshrl.u32 %v759, 7
  %v761 = vsub.s32 %v758, %v760
  %v762 = vrot.slane %v753, %v761
  %v764 = vunpack.c.l.s4 1983009808
  %v765 = vunpack.c.0.s8 %v764
  %v766 = vlaneseq
  %v767 = vshrl.u32 %v766, 7
  %v768 = vsub.s32 %v765, %v767
  %v769 = vrot.slane %v755, %v768
  %v770 = vcombine.high %v762, %v762
  %v771 = vcombine.high %v769, %v769
  %776 = vmatprep.subr.mxu0 0.0
  %777 = vmatpush1.msra.mxu0 %v689
  %778 = vmatprep.subr.mxu0 0.0
  %779 = vmatpush1.msra.mxu0 %v690
  %780 = vmatprep.subr.mxu0 0.0
  %781 = vmatpush1.msra.mxu0 %v691
  %782 = vmatprep.subr.mxu0 0.0
  %783 = vmatpush1.msra.mxu0 %v692
  %784 = vmatprep.subr.mxu0 0.0
  %785 = vmatpush1.msra.mxu0 %v693
  %786 = vmatprep.subr.mxu0 0.0
  %787 = vmatpush1.msra.mxu0 %v694
  %788 = vmatprep.subr.mxu0 0.0
  %789 = vmatpush1.msra.mxu0 %v695
  %790 = vmatprep.subr.mxu0 0.0
  %791 = vmatpush1.msra.mxu0 %v696
  %792 = vmatprep.subr.mxu0 0.0
  %793 = vmatpush1.msra.mxu0 %v697
  %794 = vmatprep.subr.mxu0 0.0
  %795 = vmatpush1.msra.mxu0 %v698
  %796 = vmatprep.subr.mxu0 0.0
  %797 = vmatpush1.msra.mxu0 %v699
  %798 = vmatprep.subr.mxu0 0.0
  %799 = vmatpush1.msra.mxu0 %v700
  %800 = vmatprep.subr.mxu0 0.0
  %801 = vmatpush1.msra.mxu0 %v701
  %802 = vmatprep.subr.mxu0 0.0
  %803 = vmatpush1.msra.mxu0 %v702
  %804 = vmatprep.subr.mxu0 0.0
  %805 = vmatpush1.msra.mxu0 %v703
  %806 = vmatprep.subr.mxu0 0.0
  %807 = vmatpush1.msra.mxu0 %v704
  %808 = vmatprep.subr.mxu0 0.0
  %809 = vmatpush1.msra.mxu0 %v705
  %810 = vmatprep.subr.mxu0 0.0
  %811 = vmatpush1.msra.mxu0 %v706
  %812 = vmatprep.subr.mxu0 0.0
  %813 = vmatpush1.msra.mxu0 %v707
  %814 = vmatprep.subr.mxu0 0.0
  %815 = vmatpush1.msra.mxu0 %v708
  %816 = vmatprep.subr.mxu0 0.0
  %817 = vmatpush1.msra.mxu0 %v709
  %818 = vmatprep.subr.mxu0 0.0
  %819 = vmatpush1.msra.mxu0 %v710
  %820 = vmatprep.subr.mxu0 0.0
  %821 = vmatpush1.msra.mxu0 %v711
  %822 = vmatprep.subr.mxu0 0.0
  %823 = vmatpush1.msra.mxu0 %v712
  %824 = vmatprep.subr.mxu0 0.0
  %825 = vmatpush1.msra.mxu0 %v713
  %826 = vmatprep.subr.mxu0 0.0
  %827 = vmatpush1.msra.mxu0 %v714
  %828 = vmatprep.subr.mxu0 0.0
  %829 = vmatpush1.msra.mxu0 %v715
  %830 = vmatprep.subr.mxu0 0.0
  %831 = vmatpush1.msra.mxu0 %v716
  %832 = vmatprep.subr.mxu0 0.0
  %833 = vmatpush1.msra.mxu0 %v717
  %834 = vmatprep.subr.mxu0 0.0
  %835 = vmatpush1.msra.mxu0 %v718
  %836 = vmatprep.subr.mxu0 0.0
  %837 = vmatpush1.msra.mxu0 %v719
  %838 = vmatprep.subr.mxu0 0.0
  %839 = vmatpush1.msra.mxu0 %v720
  %840 = vmatprep.mubr.f32.mxu0 %v770
  %841 = vmatmul.mubr.f32.gmra.mrb[0].mxu0 %v762
  %v842 = vpop.f32.mrb[0].mxu0
  %v843 = vadd.f32 0.0, %v842
  %v844 = vpop.f32.mrb[0].mxu0
  %845 = vdwg.mxu0
  %846 = vmatprep.subr.mxu0 0.0
  %847 = vmatpush1.msra.mxu0 %v721
  %848 = vmatprep.subr.mxu0 0.0
  %849 = vmatpush1.msra.mxu0 %v722
  %850 = vmatprep.subr.mxu0 0.0
  %851 = vmatpush1.msra.mxu0 %v723
  %852 = vmatprep.subr.mxu0 0.0
  %853 = vmatpush1.msra.mxu0 %v724
  %854 = vmatprep.subr.mxu0 0.0
  %855 = vmatpush1.msra.mxu0 %v725
  %856 = vmatprep.subr.mxu0 0.0
  %857 = vmatpush1.msra.mxu0 %v726
  %858 = vmatprep.subr.mxu0 0.0
  %859 = vmatpush1.msra.mxu0 %v727
  %860 = vmatprep.subr.mxu0 0.0
  %861 = vmatpush1.msra.mxu0 %v728
  %862 = vmatprep.subr.mxu0 0.0
  %863 = vmatpush1.msra.mxu0 %v729
  %864 = vmatprep.subr.mxu0 0.0
  %865 = vmatpush1.msra.mxu0 %v730
  %866 = vmatprep.subr.mxu0 0.0
  %867 = vmatpush1.msra.mxu0 %v731
  %868 = vmatprep.subr.mxu0 0.0
  %869 = vmatpush1.msra.mxu0 %v732
  %870 = vmatprep.subr.mxu0 0.0
  %871 = vmatpush1.msra.mxu0 %v733
  %872 = vmatprep.subr.mxu0 0.0
  %873 = vmatpush1.msra.mxu0 %v734
  %874 = vmatprep.subr.mxu0 0.0
  %875 = vmatpush1.msra.mxu0 %v735
  %876 = vmatprep.subr.mxu0 0.0
  %877 = vmatpush1.msra.mxu0 %v736
  %878 = vmatprep.subr.mxu0 0.0
  %879 = vmatpush1.msra.mxu0 %v737
  %880 = vmatprep.subr.mxu0 0.0
  %881 = vmatpush1.msra.mxu0 %v738
  %882 = vmatprep.subr.mxu0 0.0
  %883 = vmatpush1.msra.mxu0 %v739
  %884 = vmatprep.subr.mxu0 0.0
  %885 = vmatpush1.msra.mxu0 %v740
  %886 = vmatprep.subr.mxu0 0.0
  %887 = vmatpush1.msra.mxu0 %v741
  %888 = vmatprep.subr.mxu0 0.0
  %889 = vmatpush1.msra.mxu0 %v742
  %890 = vmatprep.subr.mxu0 0.0
  %891 = vmatpush1.msra.mxu0 %v743
  %892 = vmatprep.subr.mxu0 0.0
  %893 = vmatpush1.msra.mxu0 %v744
  %894 = vmatprep.subr.mxu0 0.0
  %895 = vmatpush1.msra.mxu0 %v745
  %896 = vmatprep.subr.mxu0 0.0
  %897 = vmatpush1.msra.mxu0 %v746
  %898 = vmatprep.subr.mxu0 0.0
  %899 = vmatpush1.msra.mxu0 %v747
  %900 = vmatprep.subr.mxu0 0.0
  %901 = vmatpush1.msra.mxu0 %v748
  %902 = vmatprep.subr.mxu0 0.0
  %903 = vmatpush1.msra.mxu0 %v749
  %904 = vmatprep.subr.mxu0 0.0
  %905 = vmatpush1.msra.mxu0 %v750
  %906 = vmatprep.subr.mxu0 0.0
  %907 = vmatpush1.msra.mxu0 %v751
  %908 = vmatprep.subr.mxu0 0.0
  %909 = vmatpush1.msra.mxu0 %v752
  %910 = vmatprep.mubr.f32.mxu0 %v771
  %911 = vmatmul.mubr.f32.gmra.mrb[0].mxu0 %v769
  %v912 = vpop.f32.mrb[0].mxu0
  %v913 = vadd.f32 %v843, %v912
  %v914 = vpop.f32.mrb[0].mxu0
  %915 = vdwg.mxu0
  %v916 = vld [vmem:[%s3] sm:$0xff]
  %v917 = vld [vmem:[%s3 + $0x8] sm:$0xff]
  %v918 = vld [vmem:[%s3 + $0x10] sm:$0xff]
  %v919 = vld [vmem:[%s3 + $0x18] sm:$0xff]
  %v920 = vld [vmem:[%s3 + $0x20] sm:$0xff]
  %v921 = vld [vmem:[%s3 + $0x28] sm:$0xff]
  %v922 = vld [vmem:[%s3 + $0x30] sm:$0xff]
  %v923 = vld [vmem:[%s3 + $0x38] sm:$0xff]
  %v924 = vld [vmem:[%s3 + $0x40] sm:$0xff]
  %v925 = vld [vmem:[%s3 + $0x48] sm:$0xff]
  %v926 = vld [vmem:[%s3 + $0x50] sm:$0xff]
  %v927 = vld [vmem:[%s3 + $0x58] sm:$0xff]
  %v928 = vld [vmem:[%s3 + $0x60] sm:$0xff]
  %v929 = vld [vmem:[%s3 + $0x68] sm:$0xff]
  %v930 = vld [vmem:[%s3 + $0x70] sm:$0xff]
  %v931 = vld [vmem:[%s3 + $0x78] sm:$0xff]
  %v932 = vlaneseq
  %v933 = vshrl.u32 %v932, 7
  %v934 = vsub.s32 1, %v933
  %v935 = vrot.slane %v29, %v934
  %936 = vmatprep.subr.mxu0 0.0
  %937 = vmatpush1.msra.mxu0 %v916
  %938 = vmatprep.subr.mxu0 0.0
  %939 = vmatpush1.msra.mxu0 %v917
  %940 = vmatprep.subr.mxu0 0.0
  %941 = vmatpush1.msra.mxu0 %v918
  %942 = vmatprep.subr.mxu0 0.0
  %943 = vmatpush1.msra.mxu0 %v919
  %944 = vmatprep.subr.mxu0 0.0
  %945 = vmatpush1.msra.mxu0 %v920
  %946 = vmatprep.subr.mxu0 0.0
  %947 = vmatpush1.msra.mxu0 %v921
  %948 = vmatprep.subr.mxu0 0.0
  %949 = vmatpush1.msra.mxu0 %v922
  %950 = vmatprep.subr.mxu0 0.0
  %951 = vmatpush1.msra.mxu0 %v923
  %952 = vmatprep.subr.mxu0 0.0
  %953 = vmatpush1.msra.mxu0 %v924
  %954 = vmatprep.subr.mxu0 0.0
  %955 = vmatpush1.msra.mxu0 %v925
  %956 = vmatprep.subr.mxu0 0.0
  %957 = vmatpush1.msra.mxu0 %v926
  %958 = vmatprep.subr.mxu0 0.0
  %959 = vmatpush1.msra.mxu0 %v927
  %960 = vmatprep.subr.mxu0 0.0
  %961 = vmatpush1.msra.mxu0 %v928
  %962 = vmatprep.subr.mxu0 0.0
  %963 = vmatpush1.msra.mxu0 %v929
  %964 = vmatprep.subr.mxu0 0.0
  %965 = vmatpush1.msra.mxu0 %v930
  %966 = vmatprep.subr.mxu0 0.0
  %967 = vmatpush1.msra.mxu0 %v931
  %968 = vmatprep.subr.mxu0 0.0
  %969 = vmatpush1.msra.mxu0 0.0
  %970 = vmatprep.subr.mxu0 0.0
  %971 = vmatpush1.msra.mxu0 0.0
  %972 = vmatprep.subr.mxu0 0.0
  %973 = vmatpush1.msra.mxu0 0.0
  %974 = vmatprep.subr.mxu0 0.0
  %975 = vmatpush1.msra.mxu0 0.0
  %976 = vmatprep.subr.mxu0 0.0
  %977 = vmatpush1.msra.mxu0 0.0
  %978 = vmatprep.subr.mxu0 0.0
  %979 = vmatpush1.msra.mxu0 0.0
  %980 = vmatprep.subr.mxu0 0.0
  %981 = vmatpush1.msra.mxu0 0.0
  %982 = vmatprep.subr.mxu0 0.0
  %983 = vmatpush1.msra.mxu0 0.0
  %984 = vmatprep.subr.mxu0 0.0
  %985 = vmatpush1.msra.mxu0 0.0
  %986 = vmatprep.subr.mxu0 0.0
  %987 = vmatpush1.msra.mxu0 0.0
  %988 = vmatprep.subr.mxu0 0.0
  %989 = vmatpush1.msra.mxu0 0.0
  %990 = vmatprep.subr.mxu0 0.0
  %991 = vmatpush1.msra.mxu0 0.0
  %992 = vmatprep.subr.mxu0 0.0
  %993 = vmatpush1.msra.mxu0 0.0
  %994 = vmatprep.subr.mxu0 0.0
  %995 = vmatpush1.msra.mxu0 0.0
  %996 = vmatprep.subr.mxu0 0.0
  %997 = vmatpush1.msra.mxu0 0.0
  %998 = vmatprep.subr.mxu0 0.0
  %999 = vmatpush1.msra.mxu0 0.0
  %1000 = vmatprep.mubr.f32.mxu0 0.0
  %1001 = vmatmul.mubr.f32.gmra.mrb[0].mxu0 %v913
  %v1002 = vpop.f32.mrb[0].mxu0
  %v1003 = vadd.f32 %v935, %v1002
  %v1004 = vpop.f32.mrb[0].mxu0
  %1005 = vdwg.mxu0
  %v1006 = vmax.f32 %v1003, 0.0
  %v1007 = vld [vmem:[%s4] sm:$0xff]
  %v1008 = vld [vmem:[%s4 + $0x8] sm:$0xff]
  %v1009 = vld [vmem:[%s4 + $0x10] sm:$0xff]
  %v1010 = vld [vmem:[%s4 + $0x18] sm:$0xff]
  %v1011 = vld [vmem:[%s4 + $0x20] sm:$0xff]
  %v1012 = vld [vmem:[%s4 + $0x28] sm:$0xff]
  %v1013 = vld [vmem:[%s4 + $0x30] sm:$0xff]
  %v1014 = vld [vmem:[%s4 + $0x38] sm:$0xff]
  %v1015 = vld [vmem:[%s4 + $0x40] sm:$0xff]
  %v1016 = vld [vmem:[%s4 + $0x48] sm:$0xff]
  %v1017 = vld [vmem:[%s4 + $0x50] sm:$0xff]
  %v1018 = vld [vmem:[%s4 + $0x58] sm:$0xff]
  %v1019 = vld [vmem:[%s4 + $0x60] sm:$0xff]
  %v1020 = vld [vmem:[%s4 + $0x68] sm:$0xff]
  %v1021 = vld [vmem:[%s4 + $0x70] sm:$0xff]
  %v1022 = vld [vmem:[%s4 + $0x78] sm:$0xff]
  %v1023 = vld [vmem:[%s4 + $0x80] sm:$0xff]
  %v1024 = vld [vmem:[%s4 + $0x88] sm:$0xff]
  %v1025 = vld [vmem:[%s4 + $0x90] sm:$0xff]
  %v1026 = vld [vmem:[%s4 + $0x98] sm:$0xff]
  %v1027 = vld [vmem:[%s4 + $0xa0] sm:$0xff]
  %v1028 = vld [vmem:[%s4 + $0xa8] sm:$0xff]
  %v1029 = vld [vmem:[%s4 + $0xb0] sm:$0xff]
  %v1030 = vld [vmem:[%s4 + $0xb8] sm:$0xff]
  %v1031 = vld [vmem:[%s4 + $0xc0] sm:$0xff]
  %v1032 = vld [vmem:[%s4 + $0xc8] sm:$0xff]
  %v1033 = vld [vmem:[%s4 + $0xd0] sm:$0xff]
  %v1034 = vld [vmem:[%s4 + $0xd8] sm:$0xff]
  %v1035 = vld [vmem:[%s4 + $0xe0] sm:$0xff]
  %v1036 = vld [vmem:[%s4 + $0xe8] sm:$0xff]
  %v1037 = vld [vmem:[%s4 + $0xf0] sm:$0xff]
  %v1038 = vld [vmem:[%s4 + $0xf8] sm:$0xff]
  %v1039 = vld [vmem:[%s4 + $0x100] sm:$0xff]
  %v1040 = vld [vmem:[%s4 + $0x108] sm:$0xff]
  %v1041 = vld [vmem:[%s4 + $0x110] sm:$0xff]
  %v1042 = vld [vmem:[%s4 + $0x118] sm:$0xff]
  %v1043 = vld [vmem:[%s4 + $0x120] sm:$0xff]
  %v1044 = vld [vmem:[%s4 + $0x128] sm:$0xff]
  %v1045 = vld [vmem:[%s4 + $0x130] sm:$0xff]
  %v1046 = vld [vmem:[%s4 + $0x138] sm:$0xff]
  %v1047 = vld [vmem:[%s4 + $0x140] sm:$0xff]
  %v1048 = vld [vmem:[%s4 + $0x148] sm:$0xff]
  %v1049 = vld [vmem:[%s4 + $0x150] sm:$0xff]
  %v1050 = vld [vmem:[%s4 + $0x158] sm:$0xff]
  %v1051 = vld [vmem:[%s4 + $0x160] sm:$0xff]
  %v1052 = vld [vmem:[%s4 + $0x168] sm:$0xff]
  %v1053 = vld [vmem:[%s4 + $0x170] sm:$0xff]
  %v1054 = vld [vmem:[%s4 + $0x178] sm:$0xff]
  %v1055 = vld [vmem:[%s4 + $0x180] sm:$0xff]
  %v1056 = vld [vmem:[%s4 + $0x188] sm:$0xff]
  %v1057 = vld [vmem:[%s4 + $0x190] sm:$0xff]
  %v1058 = vld [vmem:[%s4 + $0x198] sm:$0xff]
  %v1059 = vld [vmem:[%s4 + $0x1a0] sm:$0xff]
  %v1060 = vld [vmem:[%s4 + $0x1a8] sm:$0xff]
  %v1061 = vld [vmem:[%s4 + $0x1b0] sm:$0xff]
  %v1062 = vld [vmem:[%s4 + $0x1b8] sm:$0xff]
  %v1063 = vld [vmem:[%s4 + $0x1c0] sm:$0xff]
  %v1064 = vld [vmem:[%s4 + $0x1c8] sm:$0xff]
  %v1065 = vld [vmem:[%s4 + $0x1d0] sm:$0xff]
  %v1066 = vld [vmem:[%s4 + $0x1d8] sm:$0xff]
  %v1067 = vld [vmem:[%s4 + $0x1e0] sm:$0xff]
  %v1068 = vld [vmem:[%s4 + $0x1e8] sm:$0xff]
  %v1069 = vld [vmem:[%s4 + $0x1f0] sm:$0xff]
  %v1070 = vld [vmem:[%s4 + $0x1f8] sm:$0xff]
  %v1071 = vld [vmem:[%s4 + $0x200] sm:$0xff]
  %v1072 = vld [vmem:[%s4 + $0x208] sm:$0xff]
  %v1073 = vld [vmem:[%s4 + $0x210] sm:$0xff]
  %v1074 = vld [vmem:[%s4 + $0x218] sm:$0xff]
  %v1075 = vld [vmem:[%s4 + $0x220] sm:$0xff]
  %v1076 = vld [vmem:[%s4 + $0x228] sm:$0xff]
  %v1077 = vld [vmem:[%s4 + $0x230] sm:$0xff]
  %v1078 = vld [vmem:[%s4 + $0x238] sm:$0xff]
  %v1079 = vld [vmem:[%s4 + $0x240] sm:$0xff]
  %v1080 = vld [vmem:[%s4 + $0x248] sm:$0xff]
  %v1081 = vld [vmem:[%s4 + $0x250] sm:$0xff]
  %v1082 = vld [vmem:[%s4 + $0x258] sm:$0xff]
  %v1083 = vld [vmem:[%s4 + $0x260] sm:$0xff]
  %v1084 = vld [vmem:[%s4 + $0x268] sm:$0xff]
  %v1085 = vld [vmem:[%s4 + $0x270] sm:$0xff]
  %v1086 = vld [vmem:[%s4 + $0x278] sm:$0xff]
  %v1087 = vld [vmem:[%s4 + $0x280] sm:$0xff]
  %v1088 = vld [vmem:[%s4 + $0x288] sm:$0xff]
  %v1089 = vld [vmem:[%s4 + $0x290] sm:$0xff]
  %v1090 = vld [vmem:[%s4 + $0x298] sm:$0xff]
  %v1091 = vld [vmem:[%s4 + $0x2a0] sm:$0xff]
  %v1092 = vld [vmem:[%s4 + $0x2a8] sm:$0xff]
  %v1093 = vld [vmem:[%s4 + $0x2b0] sm:$0xff]
  %v1094 = vld [vmem:[%s4 + $0x2b8] sm:$0xff]
  %v1095 = vld [vmem:[%s4 + $0x2c0] sm:$0xff]
  %v1096 = vld [vmem:[%s4 + $0x2c8] sm:$0xff]
  %v1097 = vld [vmem:[%s4 + $0x2d0] sm:$0xff]
  %v1098 = vld [vmem:[%s4 + $0x2d8] sm:$0xff]
  %v1099 = vld [vmem:[%s4 + $0x2e0] sm:$0xff]
  %v1100 = vld [vmem:[%s4 + $0x2e8] sm:$0xff]
  %v1101 = vld [vmem:[%s4 + $0x2f0] sm:$0xff]
  %v1102 = vld [vmem:[%s4 + $0x2f8] sm:$0xff]
  %v1103 = vld [vmem:[%s4 + $0x300] sm:$0xff]
  %v1104 = vld [vmem:[%s4 + $0x308] sm:$0xff]
  %v1105 = vld [vmem:[%s4 + $0x310] sm:$0xff]
  %v1106 = vld [vmem:[%s4 + $0x318] sm:$0xff]
  %v1107 = vld [vmem:[%s4 + $0x320] sm:$0xff]
  %v1108 = vld [vmem:[%s4 + $0x328] sm:$0xff]
  %v1109 = vld [vmem:[%s4 + $0x330] sm:$0xff]
  %v1110 = vld [vmem:[%s4 + $0x338] sm:$0xff]
  %v1111 = vld [vmem:[%s4 + $0x340] sm:$0xff]
  %v1112 = vld [vmem:[%s4 + $0x348] sm:$0xff]
  %v1113 = vld [vmem:[%s4 + $0x350] sm:$0xff]
  %v1114 = vld [vmem:[%s4 + $0x358] sm:$0xff]
  %v1115 = vld [vmem:[%s4 + $0x360] sm:$0xff]
  %v1116 = vld [vmem:[%s4 + $0x368] sm:$0xff]
  %v1117 = vld [vmem:[%s4 + $0x370] sm:$0xff]
  %v1118 = vld [vmem:[%s4 + $0x378] sm:$0xff]
  %v1119 = vld [vmem:[%s4 + $0x380] sm:$0xff]
  %v1120 = vld [vmem:[%s4 + $0x388] sm:$0xff]
  %v1121 = vld [vmem:[%s4 + $0x390] sm:$0xff]
  %v1122 = vld [vmem:[%s4 + $0x398] sm:$0xff]
  %v1123 = vld [vmem:[%s4 + $0x3a0] sm:$0xff]
  %v1124 = vld [vmem:[%s4 + $0x3a8] sm:$0xff]
  %v1125 = vld [vmem:[%s4 + $0x3b0] sm:$0xff]
  %v1126 = vld [vmem:[%s4 + $0x3b8] sm:$0xff]
  %v1127 = vld [vmem:[%s4 + $0x3c0] sm:$0xff]
  %v1128 = vld [vmem:[%s4 + $0x3c8] sm:$0xff]
  %v1129 = vld [vmem:[%s4 + $0x3d0] sm:$0xff]
  %v1130 = vld [vmem:[%s4 + $0x3d8] sm:$0xff]
  %v1131 = vld [vmem:[%s4 + $0x3e0] sm:$0xff]
  %v1132 = vld [vmem:[%s4 + $0x3e8] sm:$0xff]
  %v1133 = vld [vmem:[%s4 + $0x3f0] sm:$0xff]
  %v1134 = vld [vmem:[%s4 + $0x3f8] sm:$0xff]
  %v1139 = vlaneseq
  %v1140 = vshrl.u32 %v1139, 7
  %v1141 = vsub.s32 0, %v1140
  %v1142 = vrot.slane %v30, %v1141
  %v1143 = vlaneseq
  %v1144 = vshrl.u32 %v1143, 7
  %v1145 = vsub.s32 4, %v1144
  %v1146 = vrot.slane %v30, %v1145
  %v1147 = vlaneseq
  %v1148 = vshrl.u32 %v1147, 7
  %v1149 = vsub.s32 0, %v1148
  %v1150 = vrot.slane %v31, %v1149
  %v1151 = vlaneseq
  %v1152 = vshrl.u32 %v1151, 7
  %v1153 = vsub.s32 4, %v1152
  %v1154 = vrot.slane %v31, %v1153
  %v1155 = vlaneseq
  %v1156 = vshrl.u32 %v1155, 7
  %v1157 = vsub.s32 0, %v1156
  %v1158 = vrot.slane %v32, %v1157
  %v1159 = vlaneseq
  %v1160 = vshrl.u32 %v1159, 7
  %v1161 = vsub.s32 4, %v1160
  %v1162 = vrot.slane %v32, %v1161
  %v1163 = vlaneseq
  %v1164 = vshrl.u32 %v1163, 7
  %v1165 = vsub.s32 0, %v1164
  %v1166 = vrot.slane %v33, %v1165
  %v1167 = vlaneseq
  %v1168 = vshrl.u32 %v1167, 7
  %v1169 = vsub.s32 4, %v1168
  %v1170 = vrot.slane %v33, %v1169
  %v1179 = vlaneseq
  %v1180 = vshrl.u32 %v1179, 7
  %v1181 = vsub.s32 0, %v1180
  %v1182 = vrot.slane %v1142, %v1181
  %v1183 = vlaneseq
  %v1184 = vshrl.u32 %v1183, 7
  %v1185 = vsub.s32 0, %v1184
  %v1186 = vrot.slane %v1146, %v1185
  %v1187 = vlaneseq
  %v1188 = vshrl.u32 %v1187, 7
  %v1189 = vsub.s32 0, %v1188
  %v1190 = vrot.slane %v1150, %v1189
  %v1191 = vlaneseq
  %v1192 = vshrl.u32 %v1191, 7
  %v1193 = vsub.s32 0, %v1192
  %v1194 = vrot.slane %v1154, %v1193
  %v1195 = vlaneseq
  %v1196 = vshrl.u32 %v1195, 7
  %v1197 = vsub.s32 0, %v1196
  %v1198 = vrot.slane %v1158, %v1197
  %v1199 = vlaneseq
  %v1200 = vshrl.u32 %v1199, 7
  %v1201 = vsub.s32 0, %v1200
  %v1202 = vrot.slane %v1162, %v1201
  %v1203 = vlaneseq
  %v1204 = vshrl.u32 %v1203, 7
  %v1205 = vsub.s32 0, %v1204
  %v1206 = vrot.slane %v1166, %v1205
  %v1207 = vlaneseq
  %v1208 = vshrl.u32 %v1207, 7
  %v1209 = vsub.s32 0, %v1208
  %v1210 = vrot.slane %v1170, %v1209
  %1211 = vmatprep.subr.mxu0 %v1008
  %1212 = vmatpush1.msra.mxu0 %v1007
  %1213 = vmatprep.subr.mxu0 %v1016
  %1214 = vmatpush1.msra.mxu0 %v1015
  %1215 = vmatprep.subr.mxu0 %v1024
  %1216 = vmatpush1.msra.mxu0 %v1023
  %1217 = vmatprep.subr.mxu0 %v1032
  %1218 = vmatpush1.msra.mxu0 %v1031
  %1219 = vmatprep.subr.mxu0 %v1040
  %1220 = vmatpush1.msra.mxu0 %v1039
  %1221 = vmatprep.subr.mxu0 %v1048
  %1222 = vmatpush1.msra.mxu0 %v1047
  %1223 = vmatprep.subr.mxu0 %v1056
  %1224 = vmatpush1.msra.mxu0 %v1055
  %1225 = vmatprep.subr.mxu0 %v1064
  %1226 = vmatpush1.msra.mxu0 %v1063
  %1227 = vmatprep.subr.mxu0 %v1072
  %1228 = vmatpush1.msra.mxu0 %v1071
  %1229 = vmatprep.subr.mxu0 %v1080
  %1230 = vmatpush1.msra.mxu0 %v1079
  %1231 = vmatprep.subr.mxu0 %v1088
  %1232 = vmatpush1.msra.mxu0 %v1087
  %1233 = vmatprep.subr.mxu0 %v1096
  %1234 = vmatpush1.msra.mxu0 %v1095
  %1235 = vmatprep.subr.mxu0 %v1104
  %1236 = vmatpush1.msra.mxu0 %v1103
  %1237 = vmatprep.subr.mxu0 %v1112
  %1238 = vmatpush1.msra.mxu0 %v1111
  %1239 = vmatprep.subr.mxu0 %v1120
  %1240 = vmatpush1.msra.mxu0 %v1119
  %1241 = vmatprep.subr.mxu0 %v1128
  %1242 = vmatpush1.msra.mxu0 %v1127
  %1243 = vmatprep.subr.mxu0 0.0
  %1244 = vmatpush1.msra.mxu0 0.0
  %1245 = vmatprep.subr.mxu0 0.0
  %1246 = vmatpush1.msra.mxu0 0.0
  %1247 = vmatprep.subr.mxu0 0.0
  %1248 = vmatpush1.msra.mxu0 0.0
  %1249 = vmatprep.subr.mxu0 0.0
  %1250 = vmatpush1.msra.mxu0 0.0
  %1251 = vmatprep.subr.mxu0 0.0
  %1252 = vmatpush1.msra.mxu0 0.0
  %1253 = vmatprep.subr.mxu0 0.0
  %1254 = vmatpush1.msra.mxu0 0.0
  %1255 = vmatprep.subr.mxu0 0.0
  %1256 = vmatpush1.msra.mxu0 0.0
  %1257 = vmatprep.subr.mxu0 0.0
  %1258 = vmatpush1.msra.mxu0 0.0
  %1259 = vmatprep.subr.mxu0 0.0
  %1260 = vmatpush1.msra.mxu0 0.0
  %1261 = vmatprep.subr.mxu0 0.0
  %1262 = vmatpush1.msra.mxu0 0.0
  %1263 = vmatprep.subr.mxu0 0.0
  %1264 = vmatpush1.msra.mxu0 0.0
  %1265 = vmatprep.subr.mxu0 0.0
  %1266 = vmatpush1.msra.mxu0 0.0
  %1267 = vmatprep.subr.mxu0 0.0
  %1268 = vmatpush1.msra.mxu0 0.0
  %1269 = vmatprep.subr.mxu0 0.0
  %1270 = vmatpush1.msra.mxu0 0.0
  %1271 = vmatprep.subr.mxu0 0.0
  %1272 = vmatpush1.msra.mxu0 0.0
  %1273 = vmatprep.subr.mxu0 0.0
  %1274 = vmatpush1.msra.mxu0 0.0
  %1275 = vmatprep.mubr.f32.mxu0 0.0
  %1276 = vmatmul.mubr.f32.gmra.mrb[0].mxu0 %v1006
  %v1277 = vpop.f32.mrb[0].mxu0
  %v1278 = vadd.f32 %v1182, %v1277
  %v1279 = vpop.f32.mrb[0].mxu0
  %v1280 = vadd.f32 %v1186, %v1279
  %1281 = vdwg.mxu0
  %1282 = vmatprep.subr.mxu0 %v1010
  %1283 = vmatpush1.msra.mxu0 %v1009
  %1284 = vmatprep.subr.mxu0 %v1018
  %1285 = vmatpush1.msra.mxu0 %v1017
  %1286 = vmatprep.subr.mxu0 %v1026
  %1287 = vmatpush1.msra.mxu0 %v1025
  %1288 = vmatprep.subr.mxu0 %v1034
  %1289 = vmatpush1.msra.mxu0 %v1033
  %1290 = vmatprep.subr.mxu0 %v1042
  %1291 = vmatpush1.msra.mxu0 %v1041
  %1292 = vmatprep.subr.mxu0 %v1050
  %1293 = vmatpush1.msra.mxu0 %v1049
  %1294 = vmatprep.subr.mxu0 %v1058
  %1295 = vmatpush1.msra.mxu0 %v1057
  %1296 = vmatprep.subr.mxu0 %v1066
  %1297 = vmatpush1.msra.mxu0 %v1065
  %1298 = vmatprep.subr.mxu0 %v1074
  %1299 = vmatpush1.msra.mxu0 %v1073
  %1300 = vmatprep.subr.mxu0 %v1082
  %1301 = vmatpush1.msra.mxu0 %v1081
  %1302 = vmatprep.subr.mxu0 %v1090
  %1303 = vmatpush1.msra.mxu0 %v1089
  %1304 = vmatprep.subr.mxu0 %v1098
  %1305 = vmatpush1.msra.mxu0 %v1097
  %1306 = vmatprep.subr.mxu0 %v1106
  %1307 = vmatpush1.msra.mxu0 %v1105
  %1308 = vmatprep.subr.mxu0 %v1114
  %1309 = vmatpush1.msra.mxu0 %v1113
  %1310 = vmatprep.subr.mxu0 %v1122
  %1311 = vmatpush1.msra.mxu0 %v1121
  %1312 = vmatprep.subr.mxu0 %v1130
  %1313 = vmatpush1.msra.mxu0 %v1129
  %1314 = vmatprep.subr.mxu0 0.0
  %1315 = vmatpush1.msra.mxu0 0.0
  %1316 = vmatprep.subr.mxu0 0.0
  %1317 = vmatpush1.msra.mxu0 0.0
  %1318 = vmatprep.subr.mxu0 0.0
  %1319 = vmatpush1.msra.mxu0 0.0
  %1320 = vmatprep.subr.mxu0 0.0
  %1321 = vmatpush1.msra.mxu0 0.0
  %1322 = vmatprep.subr.mxu0 0.0
  %1323 = vmatpush1.msra.mxu0 0.0
  %1324 = vmatprep.subr.mxu0 0.0
  %1325 = vmatpush1.msra.mxu0 0.0
  %1326 = vmatprep.subr.mxu0 0.0
  %1327 = vmatpush1.msra.mxu0 0.0
  %1328 = vmatprep.subr.mxu0 0.0
  %1329 = vmatpush1.msra.mxu0 0.0
  %1330 = vmatprep.subr.mxu0 0.0
  %1331 = vmatpush1.msra.mxu0 0.0
  %1332 = vmatprep.subr.mxu0 0.0
  %1333 = vmatpush1.msra.mxu0 0.0
  %1334 = vmatprep.subr.mxu0 0.0
  %1335 = vmatpush1.msra.mxu0 0.0
  %1336 = vmatprep.subr.mxu0 0.0
  %1337 = vmatpush1.msra.mxu0 0.0
  %1338 = vmatprep.subr.mxu0 0.0
  %1339 = vmatpush1.msra.mxu0 0.0
  %1340 = vmatprep.subr.mxu0 0.0
  %1341 = vmatpush1.msra.mxu0 0.0
  %1342 = vmatprep.subr.mxu0 0.0
  %1343 = vmatpush1.msra.mxu0 0.0
  %1344 = vmatprep.subr.mxu0 0.0
  %1345 = vmatpush1.msra.mxu0 0.0
  %1346 = vmatprep.mubr.f32.mxu0 0.0
  %1347 = vmatmul.mubr.f32.gmra.mrb[0].mxu0 %v1006
  %v1348 = vpop.f32.mrb[0].mxu0
  %v1349 = vadd.f32 %v1190, %v1348
  %v1350 = vpop.f32.mrb[0].mxu0
  %v1351 = vadd.f32 %v1194, %v1350
  %1352 = vdwg.mxu0
  %1353 = vmatprep.subr.mxu0 %v1012
  %1354 = vmatpush1.msra.mxu0 %v1011
  %1355 = vmatprep.subr.mxu0 %v1020
  %1356 = vmatpush1.msra.mxu0 %v1019
  %1357 = vmatprep.subr.mxu0 %v1028
  %1358 = vmatpush1.msra.mxu0 %v1027
  %1359 = vmatprep.subr.mxu0 %v1036
  %1360 = vmatpush1.msra.mxu0 %v1035
  %1361 = vmatprep.subr.mxu0 %v1044
  %1362 = vmatpush1.msra.mxu0 %v1043
  %1363 = vmatprep.subr.mxu0 %v1052
  %1364 = vmatpush1.msra.mxu0 %v1051
  %1365 = vmatprep.subr.mxu0 %v1060
  %1366 = vmatpush1.msra.mxu0 %v1059
  %1367 = vmatprep.subr.mxu0 %v1068
  %1368 = vmatpush1.msra.mxu0 %v1067
  %1369 = vmatprep.subr.mxu0 %v1076
  %1370 = vmatpush1.msra.mxu0 %v1075
  %1371 = vmatprep.subr.mxu0 %v1084
  %1372 = vmatpush1.msra.mxu0 %v1083
  %1373 = vmatprep.subr.mxu0 %v1092
  %1374 = vmatpush1.msra.mxu0 %v1091
  %1375 = vmatprep.subr.mxu0 %v1100
  %1376 = vmatpush1.msra.mxu0 %v1099
  %1377 = vmatprep.subr.mxu0 %v1108
  %1378 = vmatpush1.msra.mxu0 %v1107
  %1379 = vmatprep.subr.mxu0 %v1116
  %1380 = vmatpush1.msra.mxu0 %v1115
  %1381 = vmatprep.subr.mxu0 %v1124
  %1382 = vmatpush1.msra.mxu0 %v1123
  %1383 = vmatprep.subr.mxu0 %v1132
  %1384 = vmatpush1.msra.mxu0 %v1131
  %1385 = vmatprep.subr.mxu0 0.0
  %1386 = vmatpush1.msra.mxu0 0.0
  %1387 = vmatprep.subr.mxu0 0.0
  %1388 = vmatpush1.msra.mxu0 0.0
  %1389 = vmatprep.subr.mxu0 0.0
  %1390 = vmatpush1.msra.mxu0 0.0
  %1391 = vmatprep.subr.mxu0 0.0
  %1392 = vmatpush1.msra.mxu0 0.0
  %1393 = vmatprep.subr.mxu0 0.0
  %1394 = vmatpush1.msra.mxu0 0.0
  %1395 = vmatprep.subr.mxu0 0.0
  %1396 = vmatpush1.msra.mxu0 0.0
  %1397 = vmatprep.subr.mxu0 0.0
  %1398 = vmatpush1.msra.mxu0 0.0
  %1399 = vmatprep.subr.mxu0 0.0
  %1400 = vmatpush1.msra.mxu0 0.0
  %1401 = vmatprep.subr.mxu0 0.0
  %1402 = vmatpush1.msra.mxu0 0.0
  %1403 = vmatprep.subr.mxu0 0.0
  %1404 = vmatpush1.msra.mxu0 0.0
  %1405 = vmatprep.subr.mxu0 0.0
  %1406 = vmatpush1.msra.mxu0 0.0
  %1407 = vmatprep.subr.mxu0 0.0
  %1408 = vmatpush1.msra.mxu0 0.0
  %1409 = vmatprep.subr.mxu0 0.0
  %1410 = vmatpush1.msra.mxu0 0.0
  %1411 = vmatprep.subr.mxu0 0.0
  %1412 = vmatpush1.msra.mxu0 0.0
  %1413 = vmatprep.subr.mxu0 0.0
  %1414 = vmatpush1.msra.mxu0 0.0
  %1415 = vmatprep.subr.mxu0 0.0
  %1416 = vmatpush1.msra.mxu0 0.0
  %1417 = vmatprep.mubr.f32.mxu0 0.0
  %1418 = vmatmul.mubr.f32.gmra.mrb[0].mxu0 %v1006
  %v1419 = vpop.f32.mrb[0].mxu0
  %v1420 = vadd.f32 %v1198, %v1419
  %v1421 = vpop.f32.mrb[0].mxu0
  %v1422 = vadd.f32 %v1202, %v1421
  %1423 = vdwg.mxu0
  %1424 = vmatprep.subr.mxu0 %v1014
  %1425 = vmatpush1.msra.mxu0 %v1013
  %1426 = vmatprep.subr.mxu0 %v1022
  %1427 = vmatpush1.msra.mxu0 %v1021
  %1428 = vmatprep.subr.mxu0 %v1030
  %1429 = vmatpush1.msra.mxu0 %v1029
  %1430 = vmatprep.subr.mxu0 %v1038
  %1431 = vmatpush1.msra.mxu0 %v1037
  %1432 = vmatprep.subr.mxu0 %v1046
  %1433 = vmatpush1.msra.mxu0 %v1045
  %1434 = vmatprep.subr.mxu0 %v1054
  %1435 = vmatpush1.msra.mxu0 %v1053
  %1436 = vmatprep.subr.mxu0 %v1062
  %1437 = vmatpush1.msra.mxu0 %v1061
  %1438 = vmatprep.subr.mxu0 %v1070
  %1439 = vmatpush1.msra.mxu0 %v1069
  %1440 = vmatprep.subr.mxu0 %v1078
  %1441 = vmatpush1.msra.mxu0 %v1077
  %1442 = vmatprep.subr.mxu0 %v1086
  %1443 = vmatpush1.msra.mxu0 %v1085
  %1444 = vmatprep.subr.mxu0 %v1094
  %1445 = vmatpush1.msra.mxu0 %v1093
  %1446 = vmatprep.subr.mxu0 %v1102
  %1447 = vmatpush1.msra.mxu0 %v1101
  %1448 = vmatprep.subr.mxu0 %v1110
  %1449 = vmatpush1.msra.mxu0 %v1109
  %1450 = vmatprep.subr.mxu0 %v1118
  %1451 = vmatpush1.msra.mxu0 %v1117
  %1452 = vmatprep.subr.mxu0 %v1126
  %1453 = vmatpush1.msra.mxu0 %v1125
  %1454 = vmatprep.subr.mxu0 %v1134
  %1455 = vmatpush1.msra.mxu0 %v1133
  %1456 = vmatprep.subr.mxu0 0.0
  %1457 = vmatpush1.msra.mxu0 0.0
  %1458 = vmatprep.subr.mxu0 0.0
  %1459 = vmatpush1.msra.mxu0 0.0
  %1460 = vmatprep.subr.mxu0 0.0
  %1461 = vmatpush1.msra.mxu0 0.0
  %1462 = vmatprep.subr.mxu0 0.0
  %1463 = vmatpush1.msra.mxu0 0.0
  %1464 = vmatprep.subr.mxu0 0.0
  %1465 = vmatpush1.msra.mxu0 0.0
  %1466 = vmatprep.subr.mxu0 0.0
  %1467 = vmatpush1.msra.mxu0 0.0
  %1468 = vmatprep.subr.mxu0 0.0
  %1469 = vmatpush1.msra.mxu0 0.0
  %1470 = vmatprep.subr.mxu0 0.0
  %1471 = vmatpush1.msra.mxu0 0.0
  %1472 = vmatprep.subr.mxu0 0.0
  %1473 = vmatpush1.msra.mxu0 0.0
  %1474 = vmatprep.subr.mxu0 0.0
  %1475 = vmatpush1.msra.mxu0 0.0
  %1476 = vmatprep.subr.mxu0 0.0
  %1477 = vmatpush1.msra.mxu0 0.0
  %1478 = vmatprep.subr.mxu0 0.0
  %1479 = vmatpush1.msra.mxu0 0.0
  %1480 = vmatprep.subr.mxu0 0.0
  %1481 = vmatpush1.msra.mxu0 0.0
  %1482 = vmatprep.subr.mxu0 0.0
  %1483 = vmatpush1.msra.mxu0 0.0
  %1484 = vmatprep.subr.mxu0 0.0
  %1485 = vmatpush1.msra.mxu0 0.0
  %1486 = vmatprep.subr.mxu0 0.0
  %1487 = vmatpush1.msra.mxu0 0.0
  %1488 = vmatprep.mubr.f32.mxu0 0.0
  %1489 = vmatmul.mubr.f32.gmra.mrb[0].mxu0 %v1006
  %v1490 = vpop.f32.mrb[0].mxu0
  %v1491 = vadd.f32 %v1206, %v1490
  %v1492 = vpop.f32.mrb[0].mxu0
  %v1493 = vadd.f32 %v1210, %v1492
  %1494 = vdwg.mxu0
  %vm1495 = vcmask 1041408
  %v1496 = vsel %vm1495, %v1278, 0.0
  %v1497 = vrot.slane %v1496, 4
  %v1498 = vadd.f32 %v1496, %v1497
  %v1499 = vrot.slane %v1498, 2
  %v1500 = vadd.f32 %v1498, %v1499
  %v1501 = vrot.slane %v1500, 1
  %v1502 = vadd.f32 %v1500, %v1501
  %v1503 = vsel %vm1495, %v1280, 0.0
  %v1504 = vrot.slane %v1503, 4
  %v1505 = vadd.f32 %v1503, %v1504
  %v1506 = vrot.slane %v1505, 2
  %v1507 = vadd.f32 %v1505, %v1506
  %v1508 = vrot.slane %v1507, 1
  %v1509 = vadd.f32 %v1507, %v1508
  %v1510 = vsel %vm1495, %v1349, 0.0
  %v1511 = vrot.slane %v1510, 4
  %v1512 = vadd.f32 %v1510, %v1511
  %v1513 = vrot.slane %v1512, 2
  %v1514 = vadd.f32 %v1512, %v1513
  %v1515 = vrot.slane %v1514, 1
  %v1516 = vadd.f32 %v1514, %v1515
  %v1517 = vsel %vm1495, %v1351, 0.0
  %v1518 = vrot.slane %v1517, 4
  %v1519 = vadd.f32 %v1517, %v1518
  %v1520 = vrot.slane %v1519, 2
  %v1521 = vadd.f32 %v1519, %v1520
  %v1522 = vrot.slane %v1521, 1
  %v1523 = vadd.f32 %v1521, %v1522
  %v1524 = vsel %vm1495, %v1420, 0.0
  %v1525 = vrot.slane %v1524, 4
  %v1526 = vadd.f32 %v1524, %v1525
  %v1527 = vrot.slane %v1526, 2
  %v1528 = vadd.f32 %v1526, %v1527
  %v1529 = vrot.slane %v1528, 1
  %v1530 = vadd.f32 %v1528, %v1529
  %v1531 = vsel %vm1495, %v1422, 0.0
  %v1532 = vrot.slane %v1531, 4
  %v1533 = vadd.f32 %v1531, %v1532
  %v1534 = vrot.slane %v1533, 2
  %v1535 = vadd.f32 %v1533, %v1534
  %v1536 = vrot.slane %v1535, 1
  %v1537 = vadd.f32 %v1535, %v1536
  %v1538 = vsel %vm1495, %v1491, 0.0
  %v1539 = vrot.slane %v1538, 4
  %v1540 = vadd.f32 %v1538, %v1539
  %v1541 = vrot.slane %v1540, 2
  %v1542 = vadd.f32 %v1540, %v1541
  %v1543 = vrot.slane %v1542, 1
  %v1544 = vadd.f32 %v1542, %v1543
  %v1545 = vsel %vm1495, %v1493, 0.0
  %v1546 = vrot.slane %v1545, 4
  %v1547 = vadd.f32 %v1545, %v1546
  %v1548 = vrot.slane %v1547, 2
  %v1549 = vadd.f32 %v1547, %v1548
  %v1550 = vrot.slane %v1549, 1
  %v1551 = vadd.f32 %v1549, %v1550
  %v1552 = vrcp.pop 2.0
  %v1553 = vmul.f32 %v1502, %v1552
  %v1554 = vmul.f32 %v1509, %v1552
  %v1555 = vmul.f32 %v1516, %v1552
  %v1556 = vmul.f32 %v1523, %v1552
  %v1557 = vmul.f32 %v1530, %v1552
  %v1558 = vmul.f32 %v1537, %v1552
  %v1559 = vmul.f32 %v1544, %v1552
  %v1560 = vmul.f32 %v1551, %v1552
  %v1561 = vsub.f32 %v1278, %v1553
  %v1562 = vsub.f32 %v1280, %v1554
  %v1563 = vsub.f32 %v1349, %v1555
  %v1564 = vsub.f32 %v1351, %v1556
  %v1565 = vsub.f32 %v1420, %v1557
  %v1566 = vsub.f32 %v1422, %v1558
  %v1567 = vsub.f32 %v1491, %v1559
  %v1568 = vsub.f32 %v1493, %v1560
  %v1569 = vmul.f32 %v1561, %v1561
  %v1570 = vmul.f32 %v1562, %v1562
  %v1571 = vmul.f32 %v1563, %v1563
  %v1572 = vmul.f32 %v1564, %v1564
  %v1573 = vmul.f32 %v1565, %v1565
  %v1574 = vmul.f32 %v1566, %v1566
  %v1575 = vmul.f32 %v1567, %v1567
  %v1576 = vmul.f32 %v1568, %v1568
  %v1577 = vsel %vm1495, %v1569, 0.0
  %v1578 = vrot.slane %v1577, 4
  %v1579 = vadd.f32 %v1577, %v1578
  %v1580 = vrot.slane %v1579, 2
  %v1581 = vadd.f32 %v1579, %v1580
  %v1582 = vrot.slane %v1581, 1
  %v1583 = vadd.f32 %v1581, %v1582
  %v1584 = vsel %vm1495, %v1570, 0.0
  %v1585 = vrot.slane %v1584, 4
  %v1586 = vadd.f32 %v1584, %v1585
  %v1587 = vrot.slane %v1586, 2
  %v1588 = vadd.f32 %v1586, %v1587
  %v1589 = vrot.slane %v1588, 1
  %v1590 = vadd.f32 %v1588, %v1589
  %v1591 = vsel %vm1495, %v1571, 0.0
  %v1592 = vrot.slane %v1591, 4
  %v1593 = vadd.f32 %v1591, %v1592
  %v1594 = vrot.slane %v1593, 2
  %v1595 = vadd.f32 %v1593, %v1594
  %v1596 = vrot.slane %v1595, 1
  %v1597 = vadd.f32 %v1595, %v1596
  %v1598 = vsel %vm1495, %v1572, 0.0
  %v1599 = vrot.slane %v1598, 4
  %v1600 = vadd.f32 %v1598, %v1599
  %v1601 = vrot.slane %v1600, 2
  %v1602 = vadd.f32 %v1600, %v1601
  %v1603 = vrot.slane %v1602, 1
  %v1604 = vadd.f32 %v1602, %v1603
  %v1605 = vsel %vm1495, %v1573, 0.0
  %v1606 = vrot.slane %v1605, 4
  %v1607 = vadd.f32 %v1605, %v1606
  %v1608 = vrot.slane %v1607, 2
  %v1609 = vadd.f32 %v1607, %v1608
  %v1610 = vrot.slane %v1609, 1
  %v1611 = vadd.f32 %v1609, %v1610
  %v1612 = vsel %vm1495, %v1574, 0.0
  %v1613 = vrot.slane %v1612, 4
  %v1614 = vadd.f32 %v1612, %v1613
  %v1615 = vrot.slane %v1614, 2
  %v1616 = vadd.f32 %v1614, %v1615
  %v1617 = vrot.slane %v1616, 1
  %v1618 = vadd.f32 %v1616, %v1617
  %v1619 = vsel %vm1495, %v1575, 0.0
  %v1620 = vrot.slane %v1619, 4
  %v1621 = vadd.f32 %v1619, %v1620
  %v1622 = vrot.slane %v1621, 2
  %v1623 = vadd.f32 %v1621, %v1622
  %v1624 = vrot.slane %v1623, 1
  %v1625 = vadd.f32 %v1623, %v1624
  %v1626 = vsel %vm1495, %v1576, 0.0
  %v1627 = vrot.slane %v1626, 4
  %v1628 = vadd.f32 %v1626, %v1627
  %v1629 = vrot.slane %v1628, 2
  %v1630 = vadd.f32 %v1628, %v1629
  %v1631 = vrot.slane %v1630, 1
  %v1632 = vadd.f32 %v1630, %v1631
  %v1633 = vmul.f32 %v1583, %v1552
  %v1634 = vmul.f32 %v1590, %v1552
  %v1635 = vmul.f32 %v1597, %v1552
  %v1636 = vmul.f32 %v1604, %v1552
  %v1637 = vmul.f32 %v1611, %v1552
  %v1638 = vmul.f32 %v1618, %v1552
  %v1639 = vmul.f32 %v1625, %v1552
  %v1640 = vmul.f32 %v1632, %v1552
  %v1641 = vadd.f32 %v1633, 1e-05
  %v1642 = vadd.f32 %v1634, 1e-05
  %v1643 = vadd.f32 %v1635, 1e-05
  %v1644 = vadd.f32 %v1636, 1e-05
  %v1645 = vadd.f32 %v1637, 1e-05
  %v1646 = vadd.f32 %v1638, 1e-05
  %v1647 = vadd.f32 %v1639, 1e-05
  %v1648 = vadd.f32 %v1640, 1e-05
  %v1649 = vrsqrt.pop %v1641
  %v1650 = vrsqrt.pop %v1642
  %v1651 = vrsqrt.pop %v1643
  %v1652 = vrsqrt.pop %v1644
  %v1653 = vrsqrt.pop %v1645
  %v1654 = vrsqrt.pop %v1646
  %v1655 = vrsqrt.pop %v1647
  %v1656 = vrsqrt.pop %v1648
  %v1657 = vmul.f32 %v1561, %v1649
  %v1658 = vmul.f32 %v1562, %v1650
  %v1659 = vmul.f32 %v1563, %v1651
  %v1660 = vmul.f32 %v1564, %v1652
  %v1661 = vmul.f32 %v1565, %v1653
  %v1662 = vmul.f32 %v1566, %v1654
  %v1663 = vmul.f32 %v1567, %v1655
  %v1664 = vmul.f32 %v1568, %v1656
  %v1665 = vlaneseq
  %v1666 = vshrl.u32 %v1665, 7
  %v1667 = vsub.s32 1, %v1666
  %v1668 = vrot.slane %v30, %v1667
  %v1669 = vlaneseq
  %v1670 = vshrl.u32 %v1669, 7
  %v1671 = vsub.s32 5, %v1670
  %v1672 = vrot.slane %v30, %v1671
  %v1673 = vlaneseq
  %v1674 = vshrl.u32 %v1673, 7
  %v1675 = vsub.s32 1, %v1674
  %v1676 = vrot.slane %v31, %v1675
  %v1677 = vlaneseq
  %v1678 = vshrl.u32 %v1677, 7
  %v1679 = vsub.s32 5, %v1678
  %v1680 = vrot.slane %v31, %v1679
  %v1681 = vlaneseq
  %v1682 = vshrl.u32 %v1681, 7
  %v1683 = vsub.s32 1, %v1682
  %v1684 = vrot.slane %v32, %v1683
  %v1685 = vlaneseq
  %v1686 = vshrl.u32 %v1685, 7
  %v1687 = vsub.s32 5, %v1686
  %v1688 = vrot.slane %v32, %v1687
  %v1689 = vlaneseq
  %v1690 = vshrl.u32 %v1689, 7
  %v1691 = vsub.s32 1, %v1690
  %v1692 = vrot.slane %v33, %v1691
  %v1693 = vlaneseq
  %v1694 = vshrl.u32 %v1693, 7
  %v1695 = vsub.s32 5, %v1694
  %v1696 = vrot.slane %v33, %v1695
  %v1705 = vlaneseq
  %v1706 = vshrl.u32 %v1705, 7
  %v1707 = vsub.s32 1, %v1706
  %v1708 = vrot.slane %v1668, %v1707
  %v1709 = vlaneseq
  %v1710 = vshrl.u32 %v1709, 7
  %v1711 = vsub.s32 1, %v1710
  %v1712 = vrot.slane %v1672, %v1711
  %v1713 = vlaneseq
  %v1714 = vshrl.u32 %v1713, 7
  %v1715 = vsub.s32 1, %v1714
  %v1716 = vrot.slane %v1676, %v1715
  %v1717 = vlaneseq
  %v1718 = vshrl.u32 %v1717, 7
  %v1719 = vsub.s32 1, %v1718
  %v1720 = vrot.slane %v1680, %v1719
  %v1721 = vlaneseq
  %v1722 = vshrl.u32 %v1721, 7
  %v1723 = vsub.s32 1, %v1722
  %v1724 = vrot.slane %v1684, %v1723
  %v1725 = vlaneseq
  %v1726 = vshrl.u32 %v1725, 7
  %v1727 = vsub.s32 1, %v1726
  %v1728 = vrot.slane %v1688, %v1727
  %v1729 = vlaneseq
  %v1730 = vshrl.u32 %v1729, 7
  %v1731 = vsub.s32 1, %v1730
  %v1732 = vrot.slane %v1692, %v1731
  %v1733 = vlaneseq
  %v1734 = vshrl.u32 %v1733, 7
  %v1735 = vsub.s32 1, %v1734
  %v1736 = vrot.slane %v1696, %v1735
  %v1737 = vmul.f32 %v1657, %v1708
  %v1738 = vmul.f32 %v1658, %v1712
  %v1739 = vmul.f32 %v1659, %v1716
  %v1740 = vmul.f32 %v1660, %v1720
  %v1741 = vmul.f32 %v1661, %v1724
  %v1742 = vmul.f32 %v1662, %v1728
  %v1743 = vmul.f32 %v1663, %v1732
  %v1744 = vmul.f32 %v1664, %v1736
  %v1745 = vlaneseq
  %v1746 = vshrl.u32 %v1745, 7
  %v1747 = vsub.s32 2, %v1746
  %v1748 = vrot.slane %v30, %v1747
  %v1749 = vlaneseq
  %v1750 = vshrl.u32 %v1749, 7
  %v1751 = vsub.s32 6, %v1750
  %v1752 = vrot.slane %v30, %v1751
  %v1753 = vlaneseq
  %v1754 = vshrl.u32 %v1753, 7
  %v1755 = vsub.s32 2, %v1754
  %v1756 = vrot.slane %v31, %v1755
  %v1757 = vlaneseq
  %v1758 = vshrl.u32 %v1757, 7
  %v1759 = vsub.s32 6, %v1758
  %v1760 = vrot.slane %v31, %v1759
  %v1761 = vlaneseq
  %v1762 = vshrl.u32 %v1761, 7
  %v1763 = vsub.s32 2, %v1762
  %v1764 = vrot.slane %v32, %v1763
  %v1765 = vlaneseq
  %v1766 = vshrl.u32 %v1765, 7
  %v1767 = vsub.s32 6, %v1766
  %v1768 = vrot.slane %v32, %v1767
  %v1769 = vlaneseq
  %v1770 = vshrl.u32 %v1769, 7
  %v1771 = vsub.s32 2, %v1770
  %v1772 = vrot.slane %v33, %v1771
  %v1773 = vlaneseq
  %v1774 = vshrl.u32 %v1773, 7
  %v1775 = vsub.s32 6, %v1774
  %v1776 = vrot.slane %v33, %v1775
  %v1785 = vlaneseq
  %v1786 = vshrl.u32 %v1785, 7
  %v1787 = vsub.s32 2, %v1786
  %v1788 = vrot.slane %v1748, %v1787
  %v1789 = vlaneseq
  %v1790 = vshrl.u32 %v1789, 7
  %v1791 = vsub.s32 2, %v1790
  %v1792 = vrot.slane %v1752, %v1791
  %v1793 = vlaneseq
  %v1794 = vshrl.u32 %v1793, 7
  %v1795 = vsub.s32 2, %v1794
  %v1796 = vrot.slane %v1756, %v1795
  %v1797 = vlaneseq
  %v1798 = vshrl.u32 %v1797, 7
  %v1799 = vsub.s32 2, %v1798
  %v1800 = vrot.slane %v1760, %v1799
  %v1801 = vlaneseq
  %v1802 = vshrl.u32 %v1801, 7
  %v1803 = vsub.s32 2, %v1802
  %v1804 = vrot.slane %v1764, %v1803
  %v1805 = vlaneseq
  %v1806 = vshrl.u32 %v1805, 7
  %v1807 = vsub.s32 2, %v1806
  %v1808 = vrot.slane %v1768, %v1807
  %v1809 = vlaneseq
  %v1810 = vshrl.u32 %v1809, 7
  %v1811 = vsub.s32 2, %v1810
  %v1812 = vrot.slane %v1772, %v1811
  %v1813 = vlaneseq
  %v1814 = vshrl.u32 %v1813, 7
  %v1815 = vsub.s32 2, %v1814
  %v1816 = vrot.slane %v1776, %v1815
  %v1817 = vadd.f32 %v1737, %v1788
  %v1818 = vadd.f32 %v1738, %v1792
  %v1819 = vadd.f32 %v1739, %v1796
  %v1820 = vadd.f32 %v1740, %v1800
  %v1821 = vadd.f32 %v1741, %v1804
  %v1822 = vadd.f32 %v1742, %v1808
  %v1823 = vadd.f32 %v1743, %v1812
  %v1824 = vadd.f32 %v1744, %v1816
  %v1825 = vmax.f32 %v1817, 0.0
  %v1826 = vmax.f32 %v1818, 0.0
  %v1827 = vmax.f32 %v1819, 0.0
  %v1828 = vmax.f32 %v1820, 0.0
  %v1829 = vmax.f32 %v1821, 0.0
  %v1830 = vmax.f32 %v1822, 0.0
  %v1831 = vmax.f32 %v1823, 0.0
  %v1832 = vmax.f32 %v1824, 0.0
  %v1833 = vld [vmem:[%s6] sm:$0xff]
  %v1834 = vld [vmem:[%s6 + $0x8] sm:$0xff]
  %v1835 = vld [vmem:[%s6 + $0x10] sm:$0xff]
  %v1836 = vld [vmem:[%s6 + $0x18] sm:$0xff]
  %v1837 = vld [vmem:[%s6 + $0x20] sm:$0xff]
  %v1838 = vld [vmem:[%s6 + $0x28] sm:$0xff]
  %v1839 = vld [vmem:[%s6 + $0x30] sm:$0xff]
  %v1840 = vld [vmem:[%s6 + $0x38] sm:$0xff]
  %v1841 = vld [vmem:[%s6 + $0x40] sm:$0xff]
  %v1842 = vld [vmem:[%s6 + $0x48] sm:$0xff]
  %v1843 = vld [vmem:[%s6 + $0x50] sm:$0xff]
  %v1844 = vld [vmem:[%s6 + $0x58] sm:$0xff]
  %v1845 = vld [vmem:[%s6 + $0x60] sm:$0xff]
  %v1846 = vld [vmem:[%s6 + $0x68] sm:$0xff]
  %v1847 = vld [vmem:[%s6 + $0x70] sm:$0xff]
  %v1848 = vld [vmem:[%s6 + $0x78] sm:$0xff]
  %v1849 = vld [vmem:[%s6 + $0x80] sm:$0xff]
  %v1850 = vld [vmem:[%s6 + $0x88] sm:$0xff]
  %v1851 = vld [vmem:[%s6 + $0x90] sm:$0xff]
  %v1852 = vld [vmem:[%s6 + $0x98] sm:$0xff]
  %v1853 = vld [vmem:[%s6 + $0xa0] sm:$0xff]
  %v1854 = vld [vmem:[%s6 + $0xa8] sm:$0xff]
  %v1855 = vld [vmem:[%s6 + $0xb0] sm:$0xff]
  %v1856 = vld [vmem:[%s6 + $0xb8] sm:$0xff]
  %v1857 = vld [vmem:[%s6 + $0xc0] sm:$0xff]
  %v1858 = vld [vmem:[%s6 + $0xc8] sm:$0xff]
  %v1859 = vld [vmem:[%s6 + $0xd0] sm:$0xff]
  %v1860 = vld [vmem:[%s6 + $0xd8] sm:$0xff]
  %v1861 = vld [vmem:[%s6 + $0xe0] sm:$0xff]
  %v1862 = vld [vmem:[%s6 + $0xe8] sm:$0xff]
  %v1863 = vld [vmem:[%s6 + $0xf0] sm:$0xff]
  %v1864 = vld [vmem:[%s6 + $0xf8] sm:$0xff]
  %v1865 = vld [vmem:[%s6 + $0x100] sm:$0xff]
  %v1866 = vld [vmem:[%s6 + $0x108] sm:$0xff]
  %v1867 = vld [vmem:[%s6 + $0x110] sm:$0xff]
  %v1868 = vld [vmem:[%s6 + $0x118] sm:$0xff]
  %v1869 = vld [vmem:[%s6 + $0x120] sm:$0xff]
  %v1870 = vld [vmem:[%s6 + $0x128] sm:$0xff]
  %v1871 = vld [vmem:[%s6 + $0x130] sm:$0xff]
  %v1872 = vld [vmem:[%s6 + $0x138] sm:$0xff]
  %v1873 = vld [vmem:[%s6 + $0x140] sm:$0xff]
  %v1874 = vld [vmem:[%s6 + $0x148] sm:$0xff]
  %v1875 = vld [vmem:[%s6 + $0x150] sm:$0xff]
  %v1876 = vld [vmem:[%s6 + $0x158] sm:$0xff]
  %v1877 = vld [vmem:[%s6 + $0x160] sm:$0xff]
  %v1878 = vld [vmem:[%s6 + $0x168] sm:$0xff]
  %v1879 = vld [vmem:[%s6 + $0x170] sm:$0xff]
  %v1880 = vld [vmem:[%s6 + $0x178] sm:$0xff]
  %v1881 = vld [vmem:[%s6 + $0x180] sm:$0xff]
  %v1882 = vld [vmem:[%s6 + $0x188] sm:$0xff]
  %v1883 = vld [vmem:[%s6 + $0x190] sm:$0xff]
  %v1884 = vld [vmem:[%s6 + $0x198] sm:$0xff]
  %v1885 = vld [vmem:[%s6 + $0x1a0] sm:$0xff]
  %v1886 = vld [vmem:[%s6 + $0x1a8] sm:$0xff]
  %v1887 = vld [vmem:[%s6 + $0x1b0] sm:$0xff]
  %v1888 = vld [vmem:[%s6 + $0x1b8] sm:$0xff]
  %v1889 = vld [vmem:[%s6 + $0x1c0] sm:$0xff]
  %v1890 = vld [vmem:[%s6 + $0x1c8] sm:$0xff]
  %v1891 = vld [vmem:[%s6 + $0x1d0] sm:$0xff]
  %v1892 = vld [vmem:[%s6 + $0x1d8] sm:$0xff]
  %v1893 = vld [vmem:[%s6 + $0x1e0] sm:$0xff]
  %v1894 = vld [vmem:[%s6 + $0x1e8] sm:$0xff]
  %v1895 = vld [vmem:[%s6 + $0x1f0] sm:$0xff]
  %v1896 = vld [vmem:[%s6 + $0x1f8] sm:$0xff]
  %v1897 = vld [vmem:[%s6 + $0x200] sm:$0xff]
  %v1898 = vld [vmem:[%s6 + $0x208] sm:$0xff]
  %v1899 = vld [vmem:[%s6 + $0x210] sm:$0xff]
  %v1900 = vld [vmem:[%s6 + $0x218] sm:$0xff]
  %v1901 = vld [vmem:[%s6 + $0x220] sm:$0xff]
  %v1902 = vld [vmem:[%s6 + $0x228] sm:$0xff]
  %v1903 = vld [vmem:[%s6 + $0x230] sm:$0xff]
  %v1904 = vld [vmem:[%s6 + $0x238] sm:$0xff]
  %v1905 = vld [vmem:[%s6 + $0x240] sm:$0xff]
  %v1906 = vld [vmem:[%s6 + $0x248] sm:$0xff]
  %v1907 = vld [vmem:[%s6 + $0x250] sm:$0xff]
  %v1908 = vld [vmem:[%s6 + $0x258] sm:$0xff]
  %v1909 = vld [vmem:[%s6 + $0x260] sm:$0xff]
  %v1910 = vld [vmem:[%s6 + $0x268] sm:$0xff]
  %v1911 = vld [vmem:[%s6 + $0x270] sm:$0xff]
  %v1912 = vld [vmem:[%s6 + $0x278] sm:$0xff]
  %v1913 = vld [vmem:[%s6 + $0x280] sm:$0xff]
  %v1914 = vld [vmem:[%s6 + $0x288] sm:$0xff]
  %v1915 = vld [vmem:[%s6 + $0x290] sm:$0xff]
  %v1916 = vld [vmem:[%s6 + $0x298] sm:$0xff]
  %v1917 = vld [vmem:[%s6 + $0x2a0] sm:$0xff]
  %v1918 = vld [vmem:[%s6 + $0x2a8] sm:$0xff]
  %v1919 = vld [vmem:[%s6 + $0x2b0] sm:$0xff]
  %v1920 = vld [vmem:[%s6 + $0x2b8] sm:$0xff]
  %v1921 = vld [vmem:[%s6 + $0x2c0] sm:$0xff]
  %v1922 = vld [vmem:[%s6 + $0x2c8] sm:$0xff]
  %v1923 = vld [vmem:[%s6 + $0x2d0] sm:$0xff]
  %v1924 = vld [vmem:[%s6 + $0x2d8] sm:$0xff]
  %v1925 = vld [vmem:[%s6 + $0x2e0] sm:$0xff]
  %v1926 = vld [vmem:[%s6 + $0x2e8] sm:$0xff]
  %v1927 = vld [vmem:[%s6 + $0x2f0] sm:$0xff]
  %v1928 = vld [vmem:[%s6 + $0x2f8] sm:$0xff]
  %v1929 = vld [vmem:[%s6 + $0x300] sm:$0xff]
  %v1930 = vld [vmem:[%s6 + $0x308] sm:$0xff]
  %v1931 = vld [vmem:[%s6 + $0x310] sm:$0xff]
  %v1932 = vld [vmem:[%s6 + $0x318] sm:$0xff]
  %v1933 = vld [vmem:[%s6 + $0x320] sm:$0xff]
  %v1934 = vld [vmem:[%s6 + $0x328] sm:$0xff]
  %v1935 = vld [vmem:[%s6 + $0x330] sm:$0xff]
  %v1936 = vld [vmem:[%s6 + $0x338] sm:$0xff]
  %v1937 = vld [vmem:[%s6 + $0x340] sm:$0xff]
  %v1938 = vld [vmem:[%s6 + $0x348] sm:$0xff]
  %v1939 = vld [vmem:[%s6 + $0x350] sm:$0xff]
  %v1940 = vld [vmem:[%s6 + $0x358] sm:$0xff]
  %v1941 = vld [vmem:[%s6 + $0x360] sm:$0xff]
  %v1942 = vld [vmem:[%s6 + $0x368] sm:$0xff]
  %v1943 = vld [vmem:[%s6 + $0x370] sm:$0xff]
  %v1944 = vld [vmem:[%s6 + $0x378] sm:$0xff]
  %v1945 = vld [vmem:[%s6 + $0x380] sm:$0xff]
  %v1946 = vld [vmem:[%s6 + $0x388] sm:$0xff]
  %v1947 = vld [vmem:[%s6 + $0x390] sm:$0xff]
  %v1948 = vld [vmem:[%s6 + $0x398] sm:$0xff]
  %v1949 = vld [vmem:[%s6 + $0x3a0] sm:$0xff]
  %v1950 = vld [vmem:[%s6 + $0x3a8] sm:$0xff]
  %v1951 = vld [vmem:[%s6 + $0x3b0] sm:$0xff]
  %v1952 = vld [vmem:[%s6 + $0x3b8] sm:$0xff]
  %v1953 = vld [vmem:[%s6 + $0x3c0] sm:$0xff]
  %v1954 = vld [vmem:[%s6 + $0x3c8] sm:$0xff]
  %v1955 = vld [vmem:[%s6 + $0x3d0] sm:$0xff]
  %v1956 = vld [vmem:[%s6 + $0x3d8] sm:$0xff]
  %v1957 = vld [vmem:[%s6 + $0x3e0] sm:$0xff]
  %v1958 = vld [vmem:[%s6 + $0x3e8] sm:$0xff]
  %v1959 = vld [vmem:[%s6 + $0x3f0] sm:$0xff]
  %v1960 = vld [vmem:[%s6 + $0x3f8] sm:$0xff]
  %v1961 = vlaneseq
  %v1962 = vshrl.u32 %v1961, 7
  %v1963 = vsub.s32 2, %v1962
  %v1964 = vrot.slane %v29, %v1963
  %1965 = vmatprep.subr.mxu0 0.0
  %1966 = vmatpush1.msra.mxu0 %v1833
  %1967 = vmatprep.subr.mxu0 0.0
  %1968 = vmatpush1.msra.mxu0 %v1834
  %1969 = vmatprep.subr.mxu0 0.0
  %1970 = vmatpush1.msra.mxu0 %v1835
  %1971 = vmatprep.subr.mxu0 0.0
  %1972 = vmatpush1.msra.mxu0 %v1836
  %1973 = vmatprep.subr.mxu0 0.0
  %1974 = vmatpush1.msra.mxu0 %v1837
  %1975 = vmatprep.subr.mxu0 0.0
  %1976 = vmatpush1.msra.mxu0 %v1838
  %1977 = vmatprep.subr.mxu0 0.0
  %1978 = vmatpush1.msra.mxu0 %v1839
  %1979 = vmatprep.subr.mxu0 0.0
  %1980 = vmatpush1.msra.mxu0 %v1840
  %1981 = vmatprep.subr.mxu0 0.0
  %1982 = vmatpush1.msra.mxu0 %v1841
  %1983 = vmatprep.subr.mxu0 0.0
  %1984 = vmatpush1.msra.mxu0 %v1842
  %1985 = vmatprep.subr.mxu0 0.0
  %1986 = vmatpush1.msra.mxu0 %v1843
  %1987 = vmatprep.subr.mxu0 0.0
  %1988 = vmatpush1.msra.mxu0 %v1844
  %1989 = vmatprep.subr.mxu0 0.0
  %1990 = vmatpush1.msra.mxu0 %v1845
  %1991 = vmatprep.subr.mxu0 0.0
  %1992 = vmatpush1.msra.mxu0 %v1846
  %1993 = vmatprep.subr.mxu0 0.0
  %1994 = vmatpush1.msra.mxu0 %v1847
  %1995 = vmatprep.subr.mxu0 0.0
  %1996 = vmatpush1.msra.mxu0 %v1848
  %1997 = vmatprep.subr.mxu0 0.0
  %1998 = vmatpush1.msra.mxu0 %v1849
  %1999 = vmatprep.subr.mxu0 0.0
  %2000 = vmatpush1.msra.mxu0 %v1850
  %2001 = vmatprep.subr.mxu0 0.0
  %2002 = vmatpush1.msra.mxu0 %v1851
  %2003 = vmatprep.subr.mxu0 0.0
  %2004 = vmatpush1.msra.mxu0 %v1852
  %2005 = vmatprep.subr.mxu0 0.0
  %2006 = vmatpush1.msra.mxu0 %v1853
  %2007 = vmatprep.subr.mxu0 0.0
  %2008 = vmatpush1.msra.mxu0 %v1854
  %2009 = vmatprep.subr.mxu0 0.0
  %2010 = vmatpush1.msra.mxu0 %v1855
  %2011 = vmatprep.subr.mxu0 0.0
  %2012 = vmatpush1.msra.mxu0 %v1856
  %2013 = vmatprep.subr.mxu0 0.0
  %2014 = vmatpush1.msra.mxu0 %v1857
  %2015 = vmatprep.subr.mxu0 0.0
  %2016 = vmatpush1.msra.mxu0 %v1858
  %2017 = vmatprep.subr.mxu0 0.0
  %2018 = vmatpush1.msra.mxu0 %v1859
  %2019 = vmatprep.subr.mxu0 0.0
  %2020 = vmatpush1.msra.mxu0 %v1860
  %2021 = vmatprep.subr.mxu0 0.0
  %2022 = vmatpush1.msra.mxu0 %v1861
  %2023 = vmatprep.subr.mxu0 0.0
  %2024 = vmatpush1.msra.mxu0 %v1862
  %2025 = vmatprep.subr.mxu0 0.0
  %2026 = vmatpush1.msra.mxu0 %v1863
  %2027 = vmatprep.subr.mxu0 0.0
  %2028 = vmatpush1.msra.mxu0 %v1864
  %2029 = vmatprep.mubr.f32.mxu0 %v1826
  %2030 = vmatmul.mubr.f32.gmra.mrb[0].mxu0 %v1825
  %v2031 = vpop.f32.mrb[0].mxu0
  %v2032 = vadd.f32 %v1964, %v2031
  %v2033 = vpop.f32.mrb[0].mxu0
  %2034 = vdwg.mxu0
  %2035 = vmatprep.subr.mxu0 0.0
  %2036 = vmatpush1.msra.mxu0 %v1865
  %2037 = vmatprep.subr.mxu0 0.0
  %2038 = vmatpush1.msra.mxu0 %v1866
  %2039 = vmatprep.subr.mxu0 0.0
  %2040 = vmatpush1.msra.mxu0 %v1867
  %2041 = vmatprep.subr.mxu0 0.0
  %2042 = vmatpush1.msra.mxu0 %v1868
  %2043 = vmatprep.subr.mxu0 0.0
  %2044 = vmatpush1.msra.mxu0 %v1869
  %2045 = vmatprep.subr.mxu0 0.0
  %2046 = vmatpush1.msra.mxu0 %v1870
  %2047 = vmatprep.subr.mxu0 0.0
  %2048 = vmatpush1.msra.mxu0 %v1871
  %2049 = vmatprep.subr.mxu0 0.0
  %2050 = vmatpush1.msra.mxu0 %v1872
  %2051 = vmatprep.subr.mxu0 0.0
  %2052 = vmatpush1.msra.mxu0 %v1873
  %2053 = vmatprep.subr.mxu0 0.0
  %2054 = vmatpush1.msra.mxu0 %v1874
  %2055 = vmatprep.subr.mxu0 0.0
  %2056 = vmatpush1.msra.mxu0 %v1875
  %2057 = vmatprep.subr.mxu0 0.0
  %2058 = vmatpush1.msra.mxu0 %v1876
  %2059 = vmatprep.subr.mxu0 0.0
  %2060 = vmatpush1.msra.mxu0 %v1877
  %2061 = vmatprep.subr.mxu0 0.0
  %2062 = vmatpush1.msra.mxu0 %v1878
  %2063 = vmatprep.subr.mxu0 0.0
  %2064 = vmatpush1.msra.mxu0 %v1879
  %2065 = vmatprep.subr.mxu0 0.0
  %2066 = vmatpush1.msra.mxu0 %v1880
  %2067 = vmatprep.subr.mxu0 0.0
  %2068 = vmatpush1.msra.mxu0 %v1881
  %2069 = vmatprep.subr.mxu0 0.0
  %2070 = vmatpush1.msra.mxu0 %v1882
  %2071 = vmatprep.subr.mxu0 0.0
  %2072 = vmatpush1.msra.mxu0 %v1883
  %2073 = vmatprep.subr.mxu0 0.0
  %2074 = vmatpush1.msra.mxu0 %v1884
  %2075 = vmatprep.subr.mxu0 0.0
  %2076 = vmatpush1.msra.mxu0 %v1885
  %2077 = vmatprep.subr.mxu0 0.0
  %2078 = vmatpush1.msra.mxu0 %v1886
  %2079 = vmatprep.subr.mxu0 0.0
  %2080 = vmatpush1.msra.mxu0 %v1887
  %2081 = vmatprep.subr.mxu0 0.0
  %2082 = vmatpush1.msra.mxu0 %v1888
  %2083 = vmatprep.subr.mxu0 0.0
  %2084 = vmatpush1.msra.mxu0 %v1889
  %2085 = vmatprep.subr.mxu0 0.0
  %2086 = vmatpush1.msra.mxu0 %v1890
  %2087 = vmatprep.subr.mxu0 0.0
  %2088 = vmatpush1.msra.mxu0 %v1891
  %2089 = vmatprep.subr.mxu0 0.0
  %2090 = vmatpush1.msra.mxu0 %v1892
  %2091 = vmatprep.subr.mxu0 0.0
  %2092 = vmatpush1.msra.mxu0 %v1893
  %2093 = vmatprep.subr.mxu0 0.0
  %2094 = vmatpush1.msra.mxu0 %v1894
  %2095 = vmatprep.subr.mxu0 0.0
  %2096 = vmatpush1.msra.mxu0 %v1895
  %2097 = vmatprep.subr.mxu0 0.0
  %2098 = vmatpush1.msra.mxu0 %v1896
  %2099 = vmatprep.mubr.f32.mxu0 %v1828
  %2100 = vmatmul.mubr.f32.gmra.mrb[0].mxu0 %v1827
  %v2101 = vpop.f32.mrb[0].mxu0
  %v2102 = vadd.f32 %v2032, %v2101
  %v2103 = vpop.f32.mrb[0].mxu0
  %2104 = vdwg.mxu0
  %2105 = vmatprep.subr.mxu0 0.0
  %2106 = vmatpush1.msra.mxu0 %v1897
  %2107 = vmatprep.subr.mxu0 0.0
  %2108 = vmatpush1.msra.mxu0 %v1898
  %2109 = vmatprep.subr.mxu0 0.0
  %2110 = vmatpush1.msra.mxu0 %v1899
  %2111 = vmatprep.subr.mxu0 0.0
  %2112 = vmatpush1.msra.mxu0 %v1900
  %2113 = vmatprep.subr.mxu0 0.0
  %2114 = vmatpush1.msra.mxu0 %v1901
  %2115 = vmatprep.subr.mxu0 0.0
  %2116 = vmatpush1.msra.mxu0 %v1902
  %2117 = vmatprep.subr.mxu0 0.0
  %2118 = vmatpush1.msra.mxu0 %v1903
  %2119 = vmatprep.subr.mxu0 0.0
  %2120 = vmatpush1.msra.mxu0 %v1904
  %2121 = vmatprep.subr.mxu0 0.0
  %2122 = vmatpush1.msra.mxu0 %v1905
  %2123 = vmatprep.subr.mxu0 0.0
  %2124 = vmatpush1.msra.mxu0 %v1906
  %2125 = vmatprep.subr.mxu0 0.0
  %2126 = vmatpush1.msra.mxu0 %v1907
  %2127 = vmatprep.subr.mxu0 0.0
  %2128 = vmatpush1.msra.mxu0 %v1908
  %2129 = vmatprep.subr.mxu0 0.0
  %2130 = vmatpush1.msra.mxu0 %v1909
  %2131 = vmatprep.subr.mxu0 0.0
  %2132 = vmatpush1.msra.mxu0 %v1910
  %2133 = vmatprep.subr.mxu0 0.0
  %2134 = vmatpush1.msra.mxu0 %v1911
  %2135 = vmatprep.subr.mxu0 0.0
  %2136 = vmatpush1.msra.mxu0 %v1912
  %2137 = vmatprep.subr.mxu0 0.0
  %2138 = vmatpush1.msra.mxu0 %v1913
  %2139 = vmatprep.subr.mxu0 0.0
  %2140 = vmatpush1.msra.mxu0 %v1914
  %2141 = vmatprep.subr.mxu0 0.0
  %2142 = vmatpush1.msra.mxu0 %v1915
  %2143 = vmatprep.subr.mxu0 0.0
  %2144 = vmatpush1.msra.mxu0 %v1916
  %2145 = vmatprep.subr.mxu0 0.0
  %2146 = vmatpush1.msra.mxu0 %v1917
  %2147 = vmatprep.subr.mxu0 0.0
  %2148 = vmatpush1.msra.mxu0 %v1918
  %2149 = vmatprep.subr.mxu0 0.0
  %2150 = vmatpush1.msra.mxu0 %v1919
  %2151 = vmatprep.subr.mxu0 0.0
  %2152 = vmatpush1.msra.mxu0 %v1920
  %2153 = vmatprep.subr.mxu0 0.0
  %2154 = vmatpush1.msra.mxu0 %v1921
  %2155 = vmatprep.subr.mxu0 0.0
  %2156 = vmatpush1.msra.mxu0 %v1922
  %2157 = vmatprep.subr.mxu0 0.0
  %2158 = vmatpush1.msra.mxu0 %v1923
  %2159 = vmatprep.subr.mxu0 0.0
  %2160 = vmatpush1.msra.mxu0 %v1924
  %2161 = vmatprep.subr.mxu0 0.0
  %2162 = vmatpush1.msra.mxu0 %v1925
  %2163 = vmatprep.subr.mxu0 0.0
  %2164 = vmatpush1.msra.mxu0 %v1926
  %2165 = vmatprep.subr.mxu0 0.0
  %2166 = vmatpush1.msra.mxu0 %v1927
  %2167 = vmatprep.subr.mxu0 0.0
  %2168 = vmatpush1.msra.mxu0 %v1928
  %2169 = vmatprep.mubr.f32.mxu0 %v1830
  %2170 = vmatmul.mubr.f32.gmra.mrb[0].mxu0 %v1829
  %v2171 = vpop.f32.mrb[0].mxu0
  %v2172 = vadd.f32 %v2102, %v2171
  %v2173 = vpop.f32.mrb[0].mxu0
  %2174 = vdwg.mxu0
  %2175 = vmatprep.subr.mxu0 0.0
  %2176 = vmatpush1.msra.mxu0 %v1929
  %2177 = vmatprep.subr.mxu0 0.0
  %2178 = vmatpush1.msra.mxu0 %v1930
  %2179 = vmatprep.subr.mxu0 0.0
  %2180 = vmatpush1.msra.mxu0 %v1931
  %2181 = vmatprep.subr.mxu0 0.0
  %2182 = vmatpush1.msra.mxu0 %v1932
  %2183 = vmatprep.subr.mxu0 0.0
  %2184 = vmatpush1.msra.mxu0 %v1933
  %2185 = vmatprep.subr.mxu0 0.0
  %2186 = vmatpush1.msra.mxu0 %v1934
  %2187 = vmatprep.subr.mxu0 0.0
  %2188 = vmatpush1.msra.mxu0 %v1935
  %2189 = vmatprep.subr.mxu0 0.0
  %2190 = vmatpush1.msra.mxu0 %v1936
  %2191 = vmatprep.subr.mxu0 0.0
  %2192 = vmatpush1.msra.mxu0 %v1937
  %2193 = vmatprep.subr.mxu0 0.0
  %2194 = vmatpush1.msra.mxu0 %v1938
  %2195 = vmatprep.subr.mxu0 0.0
  %2196 = vmatpush1.msra.mxu0 %v1939
  %2197 = vmatprep.subr.mxu0 0.0
  %2198 = vmatpush1.msra.mxu0 %v1940
  %2199 = vmatprep.subr.mxu0 0.0
  %2200 = vmatpush1.msra.mxu0 %v1941
  %2201 = vmatprep.subr.mxu0 0.0
  %2202 = vmatpush1.msra.mxu0 %v1942
  %2203 = vmatprep.subr.mxu0 0.0
  %2204 = vmatpush1.msra.mxu0 %v1943
  %2205 = vmatprep.subr.mxu0 0.0
  %2206 = vmatpush1.msra.mxu0 %v1944
  %2207 = vmatprep.subr.mxu0 0.0
  %2208 = vmatpush1.msra.mxu0 %v1945
  %2209 = vmatprep.subr.mxu0 0.0
  %2210 = vmatpush1.msra.mxu0 %v1946
  %2211 = vmatprep.subr.mxu0 0.0
  %2212 = vmatpush1.msra.mxu0 %v1947
  %2213 = vmatprep.subr.mxu0 0.0
  %2214 = vmatpush1.msra.mxu0 %v1948
  %2215 = vmatprep.subr.mxu0 0.0
  %2216 = vmatpush1.msra.mxu0 %v1949
  %2217 = vmatprep.subr.mxu0 0.0
  %2218 = vmatpush1.msra.mxu0 %v1950
  %2219 = vmatprep.subr.mxu0 0.0
  %2220 = vmatpush1.msra.mxu0 %v1951
  %2221 = vmatprep.subr.mxu0 0.0
  %2222 = vmatpush1.msra.mxu0 %v1952
  %2223 = vmatprep.subr.mxu0 0.0
  %2224 = vmatpush1.msra.mxu0 %v1953
  %2225 = vmatprep.subr.mxu0 0.0
  %2226 = vmatpush1.msra.mxu0 %v1954
  %2227 = vmatprep.subr.mxu0 0.0
  %2228 = vmatpush1.msra.mxu0 %v1955
  %2229 = vmatprep.subr.mxu0 0.0
  %2230 = vmatpush1.msra.mxu0 %v1956
  %2231 = vmatprep.subr.mxu0 0.0
  %2232 = vmatpush1.msra.mxu0 %v1957
  %2233 = vmatprep.subr.mxu0 0.0
  %2234 = vmatpush1.msra.mxu0 %v1958
  %2235 = vmatprep.subr.mxu0 0.0
  %2236 = vmatpush1.msra.mxu0 %v1959
  %2237 = vmatprep.subr.mxu0 0.0
  %2238 = vmatpush1.msra.mxu0 %v1960
  %2239 = vmatprep.mubr.f32.mxu0 %v1832
  %2240 = vmatmul.mubr.f32.gmra.mrb[0].mxu0 %v1831
  %v2241 = vpop.f32.mrb[0].mxu0
  %v2242 = vadd.f32 %v2172, %v2241
  %v2243 = vpop.f32.mrb[0].mxu0
  %2244 = vdwg.mxu0
  %v2245 = vadd.f32 %v2242, %v1006
  %2246 = vst [vmem:[%s8] sm:$0x3] %v2245
  // Predicated region
  $region34: #{fl_model_forward.1} parent=0 // pred_check
    _
  $region35: #{fl_model_forward.1} parent=0 // pred_check_branch
    %2248 = sbr.rel (0) target = $region37
  $region36: #{fl_model_forward.1} parent=0 // pred_region
    _
  $region37: #{fl_model_forward.1} parent=0 // pred_fallthru
    _
  // Predicated region
  $region38: #{fl_model_forward.1} parent=0 // pred_check
    _
  $region39: #{fl_model_forward.1} parent=0 // pred_check_branch
    %2250 = sbr.rel (0) target = $region41
  $region40: #{fl_model_forward.1} parent=0 // pred_region
    _
  $region41: #{fl_model_forward.1} parent=0 // pred_fallthru
    _

</llo_original>
